<compile_context>
chip_gen: v7x
topology: tpu7x:2x2x1
jax: 0.10.0
libtpu: 0.0.40
codegen_flags: <defaults>
</compile_context>

<pallas_src>
import functools

import jax
import jax.numpy as jnp
from jax import lax
from jax.experimental import pallas as pl
from jax.experimental.pallas import tpu as pltpu


def _round_up(x, m):
    return ((x + m - 1) // m) * m


def _num_tensorcores():
    # v7x has 2 TensorCores per chip; v5e/v6e have 1.  Conservative fallback
    # to 1 if the device kind cannot be queried.
    try:
        kind = jax.devices()[0].device_kind.lower()
        if "v7" in kind:
            return 2
    except Exception:
        pass
    return 1


def _layer_norm(x, gamma, beta, eps=1e-5):
    # LayerNorm over the last dim (torch.nn.LayerNorm defaults: eps=1e-5,
    # biased variance, elementwise affine).
    mu = jnp.mean(x, axis=-1, keepdims=True)
    var = jnp.mean((x - mu) * (x - mu), axis=-1, keepdims=True)
    return (x - mu) * lax.rsqrt(var + eps) * gamma + beta


def critic_kernel(
    state_ref,    # (block_b, input_dims)
    action_ref,   # (block_b, action_dims)
    w1_ref,       # (input_dims, fc1)
    wa_ref,       # (action_dims, fc2)
    w2_ref,       # (fc1, fc2)
    vec_ref,      # (16, n_vec) packed parameter rows
    out_ref,      # (1, block_b)  -- batch on lanes (lane-dense)
    *, fc1_dims, fc2_dims,
):
    # Packed parameter slab: load once, static slices are free.
    vec = vec_ref[...]
    b1  = vec[0:1, 0:fc1_dims]
    g1  = vec[1:2, 0:fc1_dims]
    be1 = vec[2:3, 0:fc1_dims]
    b2  = vec[3:4, 0:fc2_dims]
    g2  = vec[4:5, 0:fc2_dims]
    be2 = vec[5:6, 0:fc2_dims]
    ba  = vec[6:7, 0:fc2_dims]
    wq  = vec[7:8, 0:fc2_dims]
    bq  = vec[8:9, 0:1]

    # state path: state_value = relu(ln1(fc1(state)))
    h1 = jnp.dot(state_ref[...], w1_ref[...],
                 preferred_element_type=jnp.float32) + b1
    h1 = jnp.maximum(_layer_norm(h1, g1, be1), 0.0)
    # state_value = ln2(fc2(state_value))   (no relu here, matches reference)
    h2 = jnp.dot(h1, w2_ref[...], preferred_element_type=jnp.float32) + b2
    h2 = _layer_norm(h2, g2, be2)

    # action path: action_value = relu(action_value_layer(action))
    av = jnp.maximum(
        jnp.dot(action_ref[...], wa_ref[...],
                preferred_element_type=jnp.float32) + ba, 0.0)

    # state_action_value = relu(state_value + action_value)
    sav = jnp.maximum(h2 + av, 0.0)

    # q head, lane-dense: q[0, b] = sum_f wq[0, f] * sav[b, f]  -> (1, block_b)
    q_row = lax.dot_general(
        wq, sav,
        dimension_numbers=(((1,), (1,)), ((), ())),
        preferred_element_type=jnp.float32)
    out_ref[...] = (q_row + bq).astype(out_ref.dtype)


def pack_params(params, input_dims, fc1_dims, fc2_dims, action_dims):
    """Build packed operands ONCE: weights as [in,out], all 1-D params in one slab."""
    (w1, b1, g1, be1, w2, b2, g2, be2, wa, ba, wq, bq) = params
    n_vec = _round_up(max(fc1_dims, fc2_dims), 128)
    vec = jnp.zeros((16, n_vec), jnp.float32)
    vec = vec.at[0, :fc1_dims].set(b1.reshape(-1))
    vec = vec.at[1, :fc1_dims].set(g1.reshape(-1))
    vec = vec.at[2, :fc1_dims].set(be1.reshape(-1))
    vec = vec.at[3, :fc2_dims].set(b2.reshape(-1))
    vec = vec.at[4, :fc2_dims].set(g2.reshape(-1))
    vec = vec.at[5, :fc2_dims].set(be2.reshape(-1))
    vec = vec.at[6, :fc2_dims].set(ba.reshape(-1))
    vec = vec.at[7, :fc2_dims].set(wq.reshape(-1))   # wq is (fc2, 1) -> row
    vec = vec.at[8, 0].set(bq.reshape(-1)[0])
    return (w1, wa, w2, vec)


def critic_forward(state, action, packed_params, *, block_b=None):
    B, input_dims = state.shape
    action_dims = action.shape[1]
    (w1, wa, w2, vec) = packed_params
    fc1_dims = w1.shape[1]
    fc2_dims = w2.shape[1]

    if block_b is None:
        # Grid sized to the TC count: 1 step on single-TC chips (v5e/v6e),
        # exactly 2 steps on v7x so the "parallel" axis gives one step per TC.
        block_b = B
        if _num_tensorcores() >= 2:
            half = _round_up(pl.cdiv(B, 2), 128)
            if half < B and B % half == 0:
                block_b = half
    # Note: odd batch sizes fall back to a single full-batch block (masked
    # lane stores) -- correct, just not lane-dense.  Explicit block_b must
    # divide B and be lane-aligned (or equal B).
    assert B % block_b == 0
    assert block_b == B or block_b % 128 == 0

    def full_spec(arr):
        return pl.BlockSpec(arr.shape, lambda i: (0,) * arr.ndim)

    in_specs = [
        pl.BlockSpec((block_b, input_dims), lambda i: (i, 0)),
        pl.BlockSpec((block_b, action_dims), lambda i: (i, 0)),
        full_spec(w1), full_spec(wa), full_spec(w2), full_spec(vec),
    ]
    out_spec = pl.BlockSpec((1, block_b), lambda i: (0, i))

    kern = functools.partial(critic_kernel,
                             fc1_dims=fc1_dims, fc2_dims=fc2_dims)

    out = pl.pallas_call(
        kern,
        out_shape=jax.ShapeDtypeStruct((1, B), jnp.float32),
        grid_spec=pltpu.PrefetchScalarGridSpec(
            num_scalar_prefetch=0,
            grid=(B // block_b,),
            in_specs=in_specs,
            out_specs=out_spec,
        ),
        compiler_params=pltpu.CompilerParams(
            dimension_semantics=("parallel",)),
    )(state, action, w1, wa, w2, vec)

    # (1, B) lane-dense row -> (B, 1) column, matching the PyTorch module.
    return out.reshape(B, 1)


def init_params(key, input_dims, fc1_dims, fc2_dims, action_dims):
    """Deterministic init, mimicking PyTorch Linear default (U[-1/sqrt(fan_in), +])."""
    def linear(k, fan_in, fan_out):
        kw, kb = jax.random.split(k)
        bound = 1.0 / jnp.sqrt(fan_in)
        # Stored as [in, out] (pre-transposed relative to torch's [out, in]).
        w = jax.random.uniform(kw, (fan_in, fan_out), jnp.float32, -bound, bound)
        b = jax.random.uniform(kb, (1, fan_out), jnp.float32, -bound, bound)
        return w, b

    k1, k2, k3, k4 = jax.random.split(key, 4)
    w1, b1 = linear(k1, input_dims, fc1_dims)
    g1 = jnp.ones((1, fc1_dims), jnp.float32)
    be1 = jnp.zeros((1, fc1_dims), jnp.float32)
    w2, b2 = linear(k2, fc1_dims, fc2_dims)
    g2 = jnp.ones((1, fc2_dims), jnp.float32)
    be2 = jnp.zeros((1, fc2_dims), jnp.float32)
    wa, ba = linear(k3, action_dims, fc2_dims)
    wq, bq = linear(k4, fc2_dims, 1)
    return (w1, b1, g1, be1, w2, b2, g2, be2, wa, ba, wq, bq)


def critic_reference(state, action, params):
    (w1, b1, g1, be1, w2, b2, g2, be2, wa, ba, wq, bq) = params
    h1 = jax.nn.relu(_layer_norm(state @ w1 + b1, g1, be1))
    h2 = _layer_norm(h1 @ w2 + b2, g2, be2)
    av = jax.nn.relu(action @ wa + ba)
    sav = jax.nn.relu(h2 + av)
    return sav @ wq + bq


if __name__ == "__main__":
    B, input_dims, fc1_dims, fc2_dims, action_dims = 256, 32, 64, 32, 8

    key = jax.random.PRNGKey(0)
    k_s, k_a, k_p = jax.random.split(key, 3)
    state = jax.random.normal(k_s, (B, input_dims), jnp.float32)
    action = jax.random.normal(k_a, (B, action_dims), jnp.float32)
    params = init_params(k_p, input_dims, fc1_dims, fc2_dims, action_dims)
    packed = pack_params(params, input_dims, fc1_dims, fc2_dims, action_dims)

    # Default block_b: full batch on v5e/v6e (1 grid step), half batch on v7x
    # (2 steps, one per TensorCore).
    q = critic_forward(state, action, packed)
    q = jax.block_until_ready(q)

    q_ref = critic_reference(state, action, params)
    assert q.shape == (B, 1)
    assert jnp.allclose(q, q_ref, atol=1e-4, rtol=1e-4), (q, q_ref)

    print("KERNEL_OK")
</pallas_src>

<mosaic_0001>
module attributes {stable_mosaic.version = 11 : i64} {
  func.func @critic_kernel(%arg0: i32, %arg1: memref<256x32xf32, #tpu.memory_space<vmem>>, %arg2: memref<256x8xf32, #tpu.memory_space<vmem>>, %arg3: memref<32x64xf32, #tpu.memory_space<vmem>>, %arg4: memref<8x32xf32, #tpu.memory_space<vmem>>, %arg5: memref<64x32xf32, #tpu.memory_space<vmem>>, %arg6: memref<16x128xf32, #tpu.memory_space<vmem>>, %arg7: memref<1x256xf32, #tpu.memory_space<vmem>>) attributes {dimension_semantics = [#tpu.dimension_semantics<parallel>], iteration_bounds = array<i64: 1>, scalar_prefetch = 0 : i64, scratch_operands = 0 : i64, tpu.core_type = #tpu.core_type<tc>, window_params = [{transform_indices = @transform_0, window_bounds = array<i64: 256, 32>}, {transform_indices = @transform_1, window_bounds = array<i64: 256, 8>}, {pipeline_mode = #tpu.pipeline_mode<synchronous>, transform_indices = @transform_2, window_bounds = array<i64: 32, 64>}, {pipeline_mode = #tpu.pipeline_mode<synchronous>, transform_indices = @transform_3, window_bounds = array<i64: 8, 32>}, {pipeline_mode = #tpu.pipeline_mode<synchronous>, transform_indices = @transform_4, window_bounds = array<i64: 64, 32>}, {pipeline_mode = #tpu.pipeline_mode<synchronous>, transform_indices = @transform_5, window_bounds = array<i64: 16, 128>}, {transform_indices = @transform_6, window_bounds = array<i64: 1, 256>}]} {
    %c0 = arith.constant 0 : index
    %c0_0 = arith.constant 0 : index
    %0 = vector.load %arg6[%c0, %c0_0] : memref<16x128xf32, #tpu.memory_space<vmem>>, vector<16x128xf32>
    %1 = vector.extract_strided_slice %0 {offsets = [0, 0], sizes = [1, 64], strides = [1, 1]} : vector<16x128xf32> to vector<1x64xf32>
    %2 = vector.extract_strided_slice %0 {offsets = [1, 0], sizes = [1, 64], strides = [1, 1]} : vector<16x128xf32> to vector<1x64xf32>
    %3 = vector.extract_strided_slice %0 {offsets = [2, 0], sizes = [1, 64], strides = [1, 1]} : vector<16x128xf32> to vector<1x64xf32>
    %4 = vector.extract_strided_slice %0 {offsets = [3, 0], sizes = [1, 32], strides = [1, 1]} : vector<16x128xf32> to vector<1x32xf32>
    %5 = vector.extract_strided_slice %0 {offsets = [4, 0], sizes = [1, 32], strides = [1, 1]} : vector<16x128xf32> to vector<1x32xf32>
    %6 = vector.extract_strided_slice %0 {offsets = [5, 0], sizes = [1, 32], strides = [1, 1]} : vector<16x128xf32> to vector<1x32xf32>
    %7 = vector.extract_strided_slice %0 {offsets = [6, 0], sizes = [1, 32], strides = [1, 1]} : vector<16x128xf32> to vector<1x32xf32>
    %8 = vector.extract_strided_slice %0 {offsets = [7, 0], sizes = [1, 32], strides = [1, 1]} : vector<16x128xf32> to vector<1x32xf32>
    %9 = vector.extract_strided_slice %0 {offsets = [8, 0], sizes = [1, 1], strides = [1, 1]} : vector<16x128xf32> to vector<1x1xf32>
    %c0_1 = arith.constant 0 : index
    %c0_2 = arith.constant 0 : index
    %10 = vector.load %arg1[%c0_1, %c0_2] : memref<256x32xf32, #tpu.memory_space<vmem>>, vector<256x32xf32>
    %c0_3 = arith.constant 0 : index
    %c0_4 = arith.constant 0 : index
    %11 = vector.load %arg3[%c0_3, %c0_4] : memref<32x64xf32, #tpu.memory_space<vmem>>, vector<32x64xf32>
    %cst = arith.constant dense<0.000000e+00> : vector<256x64xf32>
    %12 = tpu.matmul %10, %11, %cst {dimension_numbers = #tpu.dot_dimension_numbers<[1], [0], [0], [1], [0, 0, 1, 1], [], []>} : vector<256x32xf32>, vector<32x64xf32>, vector<256x64xf32> -> vector<256x64xf32>
    %13 = vector.broadcast %1 : vector<1x64xf32> to vector<256x64xf32>
    %14 = arith.addf %12, %13 : vector<256x64xf32>
    %cst_5 = arith.constant dense<0.000000e+00> : vector<256xf32>
    %15 = vector.multi_reduction <add>, %14, %cst_5 [1] : vector<256x64xf32> to vector<256xf32>
    %16 = vector.shape_cast %15 : vector<256xf32> to vector<256x1xf32>
    %cst_6 = arith.constant 6.400000e+01 : f32
    %17 = vector.broadcast %cst_6 : f32 to vector<256x1xf32>
    %18 = arith.divf %16, %17 : vector<256x1xf32>
    %19 = vector.broadcast %18 : vector<256x1xf32> to vector<256x64xf32>
    %20 = arith.subf %14, %19 : vector<256x64xf32>
    %21 = vector.broadcast %18 : vector<256x1xf32> to vector<256x64xf32>
    %22 = arith.subf %14, %21 : vector<256x64xf32>
    %23 = arith.mulf %20, %22 : vector<256x64xf32>
    %cst_7 = arith.constant dense<0.000000e+00> : vector<256xf32>
    %24 = vector.multi_reduction <add>, %23, %cst_7 [1] : vector<256x64xf32> to vector<256xf32>
    %25 = vector.shape_cast %24 : vector<256xf32> to vector<256x1xf32>
    %cst_8 = arith.constant 6.400000e+01 : f32
    %26 = vector.broadcast %cst_8 : f32 to vector<256x1xf32>
    %27 = arith.divf %25, %26 : vector<256x1xf32>
    %28 = vector.broadcast %18 : vector<256x1xf32> to vector<256x64xf32>
    %29 = arith.subf %14, %28 : vector<256x64xf32>
    %cst_9 = arith.constant 9.99999974E-6 : f32
    %30 = vector.broadcast %cst_9 : f32 to vector<256x1xf32>
    %31 = arith.addf %27, %30 : vector<256x1xf32>
    %32 = math.rsqrt %31 : vector<256x1xf32>
    %33 = vector.broadcast %32 : vector<256x1xf32> to vector<256x64xf32>
    %34 = arith.mulf %29, %33 : vector<256x64xf32>
    %35 = vector.broadcast %2 : vector<1x64xf32> to vector<256x64xf32>
    %36 = arith.mulf %34, %35 : vector<256x64xf32>
    %37 = vector.broadcast %3 : vector<1x64xf32> to vector<256x64xf32>
    %38 = arith.addf %36, %37 : vector<256x64xf32>
    %cst_10 = arith.constant 0.000000e+00 : f32
    %39 = vector.broadcast %cst_10 : f32 to vector<256x64xf32>
    %40 = arith.maximumf %38, %39 : vector<256x64xf32>
    %c0_11 = arith.constant 0 : index
    %c0_12 = arith.constant 0 : index
    %41 = vector.load %arg5[%c0_11, %c0_12] : memref<64x32xf32, #tpu.memory_space<vmem>>, vector<64x32xf32>
    %cst_13 = arith.constant dense<0.000000e+00> : vector<256x32xf32>
    %42 = tpu.matmul %40, %41, %cst_13 {dimension_numbers = #tpu.dot_dimension_numbers<[1], [0], [0], [1], [0, 0, 1, 1], [], []>} : vector<256x64xf32>, vector<64x32xf32>, vector<256x32xf32> -> vector<256x32xf32>
    %43 = vector.broadcast %4 : vector<1x32xf32> to vector<256x32xf32>
    %44 = arith.addf %42, %43 : vector<256x32xf32>
    %cst_14 = arith.constant dense<0.000000e+00> : vector<256xf32>
    %45 = vector.multi_reduction <add>, %44, %cst_14 [1] : vector<256x32xf32> to vector<256xf32>
    %46 = vector.shape_cast %45 : vector<256xf32> to vector<256x1xf32>
    %cst_15 = arith.constant 3.200000e+01 : f32
    %47 = vector.broadcast %cst_15 : f32 to vector<256x1xf32>
    %48 = arith.divf %46, %47 : vector<256x1xf32>
    %49 = vector.broadcast %48 : vector<256x1xf32> to vector<256x32xf32>
    %50 = arith.subf %44, %49 : vector<256x32xf32>
    %51 = vector.broadcast %48 : vector<256x1xf32> to vector<256x32xf32>
    %52 = arith.subf %44, %51 : vector<256x32xf32>
    %53 = arith.mulf %50, %52 : vector<256x32xf32>
    %cst_16 = arith.constant dense<0.000000e+00> : vector<256xf32>
    %54 = vector.multi_reduction <add>, %53, %cst_16 [1] : vector<256x32xf32> to vector<256xf32>
    %55 = vector.shape_cast %54 : vector<256xf32> to vector<256x1xf32>
    %cst_17 = arith.constant 3.200000e+01 : f32
    %56 = vector.broadcast %cst_17 : f32 to vector<256x1xf32>
    %57 = arith.divf %55, %56 : vector<256x1xf32>
    %58 = vector.broadcast %48 : vector<256x1xf32> to vector<256x32xf32>
    %59 = arith.subf %44, %58 : vector<256x32xf32>
    %cst_18 = arith.constant 9.99999974E-6 : f32
    %60 = vector.broadcast %cst_18 : f32 to vector<256x1xf32>
    %61 = arith.addf %57, %60 : vector<256x1xf32>
    %62 = math.rsqrt %61 : vector<256x1xf32>
    %63 = vector.broadcast %62 : vector<256x1xf32> to vector<256x32xf32>
    %64 = arith.mulf %59, %63 : vector<256x32xf32>
    %65 = vector.broadcast %5 : vector<1x32xf32> to vector<256x32xf32>
    %66 = arith.mulf %64, %65 : vector<256x32xf32>
    %67 = vector.broadcast %6 : vector<1x32xf32> to vector<256x32xf32>
    %68 = arith.addf %66, %67 : vector<256x32xf32>
    %c0_19 = arith.constant 0 : index
    %c0_20 = arith.constant 0 : index
    %69 = vector.load %arg2[%c0_19, %c0_20] : memref<256x8xf32, #tpu.memory_space<vmem>>, vector<256x8xf32>
    %c0_21 = arith.constant 0 : index
    %c0_22 = arith.constant 0 : index
    %70 = vector.load %arg4[%c0_21, %c0_22] : memref<8x32xf32, #tpu.memory_space<vmem>>, vector<8x32xf32>
    %cst_23 = arith.constant dense<0.000000e+00> : vector<256x32xf32>
    %71 = tpu.matmul %69, %70, %cst_23 {dimension_numbers = #tpu.dot_dimension_numbers<[1], [0], [0], [1], [0, 0, 1, 1], [], []>} : vector<256x8xf32>, vector<8x32xf32>, vector<256x32xf32> -> vector<256x32xf32>
    %72 = vector.broadcast %7 : vector<1x32xf32> to vector<256x32xf32>
    %73 = arith.addf %71, %72 : vector<256x32xf32>
    %cst_24 = arith.constant 0.000000e+00 : f32
    %74 = vector.broadcast %cst_24 : f32 to vector<256x32xf32>
    %75 = arith.maximumf %73, %74 : vector<256x32xf32>
    %76 = arith.addf %68, %75 : vector<256x32xf32>
    %cst_25 = arith.constant 0.000000e+00 : f32
    %77 = vector.broadcast %cst_25 : f32 to vector<256x32xf32>
    %78 = arith.maximumf %76, %77 : vector<256x32xf32>
    %cst_26 = arith.constant dense<0.000000e+00> : vector<1x256xf32>
    %79 = tpu.matmul %8, %78, %cst_26 {dimension_numbers = #tpu.dot_dimension_numbers<[1], [1], [0], [0], [0, 0, 1, 0], [], []>} : vector<1x32xf32>, vector<256x32xf32>, vector<1x256xf32> -> vector<1x256xf32>
    %80 = vector.broadcast %9 : vector<1x1xf32> to vector<1x256xf32>
    %81 = arith.addf %79, %80 : vector<1x256xf32>
    %c0_27 = arith.constant 0 : index
    %c0_28 = arith.constant 0 : index
    %82 = vector.load %arg7[%c0_27, %c0_28] : memref<1x256xf32, #tpu.memory_space<vmem>>, vector<1x256xf32>
    tpu.vector_store %arg7[%c0_27, %c0_28], %81 {strides = array<i32>} : memref<1x256xf32, #tpu.memory_space<vmem>>, vector<1x256xf32>,
    return
  }
  func.func @transform_0(%arg0: i32) -> (i32, i32) {
    %c0_i32 = arith.constant 0 : i32
    %c0_i32_0 = arith.constant 0 : i32
    return %arg0, %c0_i32 : i32, i32
  }
  func.func @transform_1(%arg0: i32) -> (i32, i32) {
    %c0_i32 = arith.constant 0 : i32
    %c0_i32_0 = arith.constant 0 : i32
    return %arg0, %c0_i32 : i32, i32
  }
  func.func @transform_2(%arg0: i32) -> (i32, i32) {
    %c0_i32 = arith.constant 0 : i32
    %c0_i32_0 = arith.constant 0 : i32
    %c0_i32_1 = arith.constant 0 : i32
    return %c0_i32, %c0_i32_0 : i32, i32
  }
  func.func @transform_3(%arg0: i32) -> (i32, i32) {
    %c0_i32 = arith.constant 0 : i32
    %c0_i32_0 = arith.constant 0 : i32
    %c0_i32_1 = arith.constant 0 : i32
    return %c0_i32, %c0_i32_0 : i32, i32
  }
  func.func @transform_4(%arg0: i32) -> (i32, i32) {
    %c0_i32 = arith.constant 0 : i32
    %c0_i32_0 = arith.constant 0 : i32
    %c0_i32_1 = arith.constant 0 : i32
    return %c0_i32, %c0_i32_0 : i32, i32
  }
  func.func @transform_5(%arg0: i32) -> (i32, i32) {
    %c0_i32 = arith.constant 0 : i32
    %c0_i32_0 = arith.constant 0 : i32
    %c0_i32_1 = arith.constant 0 : i32
    return %c0_i32, %c0_i32_0 : i32, i32
  }
  func.func @transform_6(%arg0: i32) -> (i32, i32) {
    %c0_i32 = arith.constant 0 : i32
    %c0_i32_0 = arith.constant 0 : i32
    return %c0_i32, %arg0 : i32, i32
  }
}

</mosaic_0001>

<llo_original>
// kernel: tpu_custom_call.1
$region0: #{tpu_custom_call.1}
  #allocation0 [shape = 'u32[]', space=smem, size = 0x4, offset = 0x4, fixed_abs, tag = 'smem constant byte address 0x4 - core index']
  #allocation1 [shape = 'u32[144,128]{1,0:T(1,128)}', space=vmem, size = 0x12000, scoped, tag = 'internal scratch']
  %s0 = inlined_call_operand.vmem [shape: f32[256,32], index: 0, kind: input, shape index: {}]
  %s1 = inlined_call_operand.vmem [shape: f32[256,8], index: 1, kind: input, shape index: {}]
  %s2 = inlined_call_operand.vmem [shape: f32[32,64], index: 2, kind: input, shape index: {}]
  %s3 = inlined_call_operand.vmem [shape: f32[8,32], index: 3, kind: input, shape index: {}]
  %s4 = inlined_call_operand.vmem [shape: f32[64,32], index: 4, kind: input, shape index: {}]
  %s5 = inlined_call_operand.vmem [shape: f32[16,128], index: 5, kind: input, shape index: {}]
  %s6 = inlined_call_operand.hbm [shape: f32[1,256], index: 6, kind: output, shape index: {}]
  %s7 = sld [smem:[#allocation0]]
  $region34: #{tpu_custom_call.1} parent=0
    _
  %s9 = ssub.s32 1, %s7
  %s10 = scalar_select 0, %s9, %s7
  $region1: #{tpu_custom_call.1} parent=0
    #allocation2 [shape = 'u8[1024]{0}', space=vmem, size = 0x400, scoped, tag = 'output window, operand 0, single buffered']
    #allocation3 [shape = 's32[1]{0}', space=sflag, size = 0x4, scoped, tag = 'scoped memory for tpu_custom_call.1']
    %11 = vsyncpa [#allocation3], 0
    // Predicated region
    $region2: #{tpu_custom_call.1} parent=1 // pred_check
      _
    $region3: #{tpu_custom_call.1} parent=1 // pred_check_branch
      %13 = sbr.rel (0) target = $region5
    $region4: #{tpu_custom_call.1} parent=1 // pred_region
      _
    $region5: #{tpu_custom_call.1} parent=1 // pred_fallthru
      _
    // Predicated region
    $region6: #{tpu_custom_call.1} parent=1 // pred_check
      _
    $region7: #{tpu_custom_call.1} parent=1 // pred_check_branch
      %15 = sbr.rel (0) target = $region9
    $region8: #{tpu_custom_call.1} parent=1 // pred_region
      _
    $region9: #{tpu_custom_call.1} parent=1 // pred_fallthru
      _
    // Predicated region
    $region10: #{tpu_custom_call.1} parent=1 // pred_check
      _
    $region11: #{tpu_custom_call.1} parent=1 // pred_check_branch
      %17 = sbr.rel (0) target = $region13
    $region12: #{tpu_custom_call.1} parent=1 // pred_region
      _
    $region13: #{tpu_custom_call.1} parent=1 // pred_fallthru
      _
    // Predicated region
    $region14: #{tpu_custom_call.1} parent=1 // pred_check
      _
    $region15: #{tpu_custom_call.1} parent=1 // pred_check_branch
      %19 = sbr.rel (0) target = $region17
    $region16: #{tpu_custom_call.1} parent=1 // pred_region
      _
    $region17: #{tpu_custom_call.1} parent=1 // pred_fallthru
      _
    // Predicated region
    $region18: #{tpu_custom_call.1} parent=1 // pred_check
      _
    $region19: #{tpu_custom_call.1} parent=1 // pred_check_branch
      %21 = sbr.rel (0) target = $region21
    $region20: #{tpu_custom_call.1} parent=1 // pred_region
      _
    $region21: #{tpu_custom_call.1} parent=1 // pred_fallthru
      _
    // Predicated region
    $region22: #{tpu_custom_call.1} parent=1 // pred_check
      _
    $region23: #{tpu_custom_call.1} parent=1 // pred_check_branch
      %23 = sbr.rel (0) target = $region25
    $region24: #{tpu_custom_call.1} parent=1 // pred_region
      _
    $region25: #{tpu_custom_call.1} parent=1 // pred_fallthru
      _
    %v24 = vld [vmem:[%s5] sm:$0xff]
    %v25 = vld [vmem:[%s5 + $0x8] sm:$0xff]
    %v26 = vld [vmem:[%s0] sm:$0xff]
    %v27 = vld [vmem:[%s0 + $0x8] sm:$0xff]
    %v28 = vld [vmem:[%s0 + $0x10] sm:$0xff]
    %v29 = vld [vmem:[%s0 + $0x18] sm:$0xff]
    %v30 = vld [vmem:[%s0 + $0x20] sm:$0xff]
    %v31 = vld [vmem:[%s0 + $0x28] sm:$0xff]
    %v32 = vld [vmem:[%s0 + $0x30] sm:$0xff]
    %v33 = vld [vmem:[%s0 + $0x38] sm:$0xff]
    %v34 = vld [vmem:[%s0 + $0x40] sm:$0xff]
    %v35 = vld [vmem:[%s0 + $0x48] sm:$0xff]
    %v36 = vld [vmem:[%s0 + $0x50] sm:$0xff]
    %v37 = vld [vmem:[%s0 + $0x58] sm:$0xff]
    %v38 = vld [vmem:[%s0 + $0x60] sm:$0xff]
    %v39 = vld [vmem:[%s0 + $0x68] sm:$0xff]
    %v40 = vld [vmem:[%s0 + $0x70] sm:$0xff]
    %v41 = vld [vmem:[%s0 + $0x78] sm:$0xff]
    %v42 = vld [vmem:[%s0 + $0x80] sm:$0xff]
    %v43 = vld [vmem:[%s0 + $0x88] sm:$0xff]
    %v44 = vld [vmem:[%s0 + $0x90] sm:$0xff]
    %v45 = vld [vmem:[%s0 + $0x98] sm:$0xff]
    %v46 = vld [vmem:[%s0 + $0xa0] sm:$0xff]
    %v47 = vld [vmem:[%s0 + $0xa8] sm:$0xff]
    %v48 = vld [vmem:[%s0 + $0xb0] sm:$0xff]
    %v49 = vld [vmem:[%s0 + $0xb8] sm:$0xff]
    %v50 = vld [vmem:[%s0 + $0xc0] sm:$0xff]
    %v51 = vld [vmem:[%s0 + $0xc8] sm:$0xff]
    %v52 = vld [vmem:[%s0 + $0xd0] sm:$0xff]
    %v53 = vld [vmem:[%s0 + $0xd8] sm:$0xff]
    %v54 = vld [vmem:[%s0 + $0xe0] sm:$0xff]
    %v55 = vld [vmem:[%s0 + $0xe8] sm:$0xff]
    %v56 = vld [vmem:[%s0 + $0xf0] sm:$0xff]
    %v57 = vld [vmem:[%s0 + $0xf8] sm:$0xff]
    %v58 = vld [vmem:[%s2] sm:$0xff]
    %v59 = vld [vmem:[%s2 + $0x8] sm:$0xff]
    %v60 = vld [vmem:[%s2 + $0x10] sm:$0xff]
    %v61 = vld [vmem:[%s2 + $0x18] sm:$0xff]
    %v62 = vlaneseq
    %v63 = vshrl.u32 %v62, 7
    %v64 = vsub.s32 0, %v63
    %v65 = vrot.slane %v24, %v64
    %vm66 = vcmask 261120
    %v68 = vsel %vm66, %v26, 0
    %v71 = vsel %vm66, %v27, 0
    %v74 = vsel %vm66, %v28, 0
    %v77 = vsel %vm66, %v29, 0
    %v80 = vsel %vm66, %v30, 0
    %v83 = vsel %vm66, %v31, 0
    %v86 = vsel %vm66, %v32, 0
    %v89 = vsel %vm66, %v33, 0
    %v92 = vsel %vm66, %v34, 0
    %v95 = vsel %vm66, %v35, 0
    %v98 = vsel %vm66, %v36, 0
    %v101 = vsel %vm66, %v37, 0
    %v104 = vsel %vm66, %v38, 0
    %v107 = vsel %vm66, %v39, 0
    %v110 = vsel %vm66, %v40, 0
    %v113 = vsel %vm66, %v41, 0
    %v116 = vsel %vm66, %v42, 0
    %v119 = vsel %vm66, %v43, 0
    %v122 = vsel %vm66, %v44, 0
    %v125 = vsel %vm66, %v45, 0
    %v128 = vsel %vm66, %v46, 0
    %v131 = vsel %vm66, %v47, 0
    %v134 = vsel %vm66, %v48, 0
    %v137 = vsel %vm66, %v49, 0
    %v140 = vsel %vm66, %v50, 0
    %v143 = vsel %vm66, %v51, 0
    %v146 = vsel %vm66, %v52, 0
    %v149 = vsel %vm66, %v53, 0
    %v152 = vsel %vm66, %v54, 0
    %v155 = vsel %vm66, %v55, 0
    %v158 = vsel %vm66, %v56, 0
    %v161 = vsel %vm66, %v57, 0
    %163 = vmatprep.subr.mxu0 0.0
    %164 = vmatpush1.msra.mxu0 %v58
    %165 = vmatprep.subr.mxu0 0.0
    %166 = vmatpush1.msra.mxu0 %v59
    %167 = vmatprep.subr.mxu0 0.0
    %168 = vmatpush1.msra.mxu0 %v60
    %169 = vmatprep.subr.mxu0 0.0
    %170 = vmatpush1.msra.mxu0 %v61
    %171 = vmatprep.subr.mxu0 0.0
    %172 = vmatpush1.msra.mxu0 0.0
    %173 = vmatprep.subr.mxu0 0.0
    %174 = vmatpush1.msra.mxu0 0.0
    %175 = vmatprep.subr.mxu0 0.0
    %176 = vmatpush1.msra.mxu0 0.0
    %177 = vmatprep.subr.mxu0 0.0
    %178 = vmatpush1.msra.mxu0 0.0
    %179 = vmatprep.subr.mxu0 0.0
    %180 = vmatpush1.msra.mxu0 0.0
    %181 = vmatprep.subr.mxu0 0.0
    %182 = vmatpush1.msra.mxu0 0.0
    %183 = vmatprep.subr.mxu0 0.0
    %184 = vmatpush1.msra.mxu0 0.0
    %185 = vmatprep.subr.mxu0 0.0
    %186 = vmatpush1.msra.mxu0 0.0
    %187 = vmatprep.subr.mxu0 0.0
    %188 = vmatpush1.msra.mxu0 0.0
    %189 = vmatprep.subr.mxu0 0.0
    %190 = vmatpush1.msra.mxu0 0.0
    %191 = vmatprep.subr.mxu0 0.0
    %192 = vmatpush1.msra.mxu0 0.0
    %193 = vmatprep.subr.mxu0 0.0
    %194 = vmatpush1.msra.mxu0 0.0
    %195 = vmatprep.subr.mxu0 0.0
    %196 = vmatpush1.msra.mxu0 0.0
    %197 = vmatprep.subr.mxu0 0.0
    %198 = vmatpush1.msra.mxu0 0.0
    %199 = vmatprep.subr.mxu0 0.0
    %200 = vmatpush1.msra.mxu0 0.0
    %201 = vmatprep.subr.mxu0 0.0
    %202 = vmatpush1.msra.mxu0 0.0
    %203 = vmatprep.subr.mxu0 0.0
    %204 = vmatpush1.msra.mxu0 0.0
    %205 = vmatprep.subr.mxu0 0.0
    %206 = vmatpush1.msra.mxu0 0.0
    %207 = vmatprep.subr.mxu0 0.0
    %208 = vmatpush1.msra.mxu0 0.0
    %209 = vmatprep.subr.mxu0 0.0
    %210 = vmatpush1.msra.mxu0 0.0
    %211 = vmatprep.subr.mxu0 0.0
    %212 = vmatpush1.msra.mxu0 0.0
    %213 = vmatprep.subr.mxu0 0.0
    %214 = vmatpush1.msra.mxu0 0.0
    %215 = vmatprep.subr.mxu0 0.0
    %216 = vmatpush1.msra.mxu0 0.0
    %217 = vmatprep.subr.mxu0 0.0
    %218 = vmatpush1.msra.mxu0 0.0
    %219 = vmatprep.subr.mxu0 0.0
    %220 = vmatpush1.msra.mxu0 0.0
    %221 = vmatprep.subr.mxu0 0.0
    %222 = vmatpush1.msra.mxu0 0.0
    %223 = vmatprep.subr.mxu0 0.0
    %224 = vmatpush1.msra.mxu0 0.0
    %225 = vmatprep.subr.mxu0 0.0
    %226 = vmatpush1.msra.mxu0 0.0
    %227 = vmatprep.mubr.f32.mxu0 0.0
    %228 = vmatmul.mubr.f32.gmra.mrb[0].mxu0 %v68
    %v229 = vpop.f32.mrb[0].mxu0
    %v230 = vadd.f32 %v65, %v229
    %v231 = vpop.f32.mrb[0].mxu0
    %232 = vmatprep.mubr.f32.mxu0 0.0
    %233 = vmatmul.mubr.f32.gmra.mrb[0].mxu0 %v71
    %v234 = vpop.f32.mrb[0].mxu0
    %v235 = vadd.f32 %v65, %v234
    %v236 = vpop.f32.mrb[0].mxu0
    %237 = vmatprep.mubr.f32.mxu0 0.0
    %238 = vmatmul.mubr.f32.gmra.mrb[0].mxu0 %v74
    %v239 = vpop.f32.mrb[0].mxu0
    %v240 = vadd.f32 %v65, %v239
    %v241 = vpop.f32.mrb[0].mxu0
    %242 = vmatprep.mubr.f32.mxu0 0.0
    %243 = vmatmul.mubr.f32.gmra.mrb[0].mxu0 %v77
    %v244 = vpop.f32.mrb[0].mxu0
    %v245 = vadd.f32 %v65, %v244
    %v246 = vpop.f32.mrb[0].mxu0
    %247 = vmatprep.mubr.f32.mxu0 0.0
    %248 = vmatmul.mubr.f32.gmra.mrb[0].mxu0 %v80
    %v249 = vpop.f32.mrb[0].mxu0
    %v250 = vadd.f32 %v65, %v249
    %v251 = vpop.f32.mrb[0].mxu0
    %252 = vmatprep.mubr.f32.mxu0 0.0
    %253 = vmatmul.mubr.f32.gmra.mrb[0].mxu0 %v83
    %v254 = vpop.f32.mrb[0].mxu0
    %v255 = vadd.f32 %v65, %v254
    %v256 = vpop.f32.mrb[0].mxu0
    %257 = vmatprep.mubr.f32.mxu0 0.0
    %258 = vmatmul.mubr.f32.gmra.mrb[0].mxu0 %v86
    %v259 = vpop.f32.mrb[0].mxu0
    %v260 = vadd.f32 %v65, %v259
    %v261 = vpop.f32.mrb[0].mxu0
    %262 = vmatprep.mubr.f32.mxu0 0.0
    %263 = vmatmul.mubr.f32.gmra.mrb[0].mxu0 %v89
    %v264 = vpop.f32.mrb[0].mxu0
    %v265 = vadd.f32 %v65, %v264
    %v266 = vpop.f32.mrb[0].mxu0
    %267 = vmatprep.mubr.f32.mxu0 0.0
    %268 = vmatmul.mubr.f32.gmra.mrb[0].mxu0 %v92
    %v269 = vpop.f32.mrb[0].mxu0
    %v270 = vadd.f32 %v65, %v269
    %v271 = vpop.f32.mrb[0].mxu0
    %272 = vmatprep.mubr.f32.mxu0 0.0
    %273 = vmatmul.mubr.f32.gmra.mrb[0].mxu0 %v95
    %v274 = vpop.f32.mrb[0].mxu0
    %v275 = vadd.f32 %v65, %v274
    %v276 = vpop.f32.mrb[0].mxu0
    %277 = vmatprep.mubr.f32.mxu0 0.0
    %278 = vmatmul.mubr.f32.gmra.mrb[0].mxu0 %v98
    %v279 = vpop.f32.mrb[0].mxu0
    %v280 = vadd.f32 %v65, %v279
    %v281 = vpop.f32.mrb[0].mxu0
    %282 = vmatprep.mubr.f32.mxu0 0.0
    %283 = vmatmul.mubr.f32.gmra.mrb[0].mxu0 %v101
    %v284 = vpop.f32.mrb[0].mxu0
    %v285 = vadd.f32 %v65, %v284
    %v286 = vpop.f32.mrb[0].mxu0
    %287 = vmatprep.mubr.f32.mxu0 0.0
    %288 = vmatmul.mubr.f32.gmra.mrb[0].mxu0 %v104
    %v289 = vpop.f32.mrb[0].mxu0
    %v290 = vadd.f32 %v65, %v289
    %v291 = vpop.f32.mrb[0].mxu0
    %292 = vmatprep.mubr.f32.mxu0 0.0
    %293 = vmatmul.mubr.f32.gmra.mrb[0].mxu0 %v107
    %v294 = vpop.f32.mrb[0].mxu0
    %v295 = vadd.f32 %v65, %v294
    %v296 = vpop.f32.mrb[0].mxu0
    %297 = vmatprep.mubr.f32.mxu0 0.0
    %298 = vmatmul.mubr.f32.gmra.mrb[0].mxu0 %v110
    %v299 = vpop.f32.mrb[0].mxu0
    %v300 = vadd.f32 %v65, %v299
    %v301 = vpop.f32.mrb[0].mxu0
    %302 = vmatprep.mubr.f32.mxu0 0.0
    %303 = vmatmul.mubr.f32.gmra.mrb[0].mxu0 %v113
    %v304 = vpop.f32.mrb[0].mxu0
    %v305 = vadd.f32 %v65, %v304
    %v306 = vpop.f32.mrb[0].mxu0
    %307 = vmatprep.mubr.f32.mxu0 0.0
    %308 = vmatmul.mubr.f32.gmra.mrb[0].mxu0 %v116
    %v309 = vpop.f32.mrb[0].mxu0
    %v310 = vadd.f32 %v65, %v309
    %v311 = vpop.f32.mrb[0].mxu0
    %312 = vmatprep.mubr.f32.mxu0 0.0
    %313 = vmatmul.mubr.f32.gmra.mrb[0].mxu0 %v119
    %v314 = vpop.f32.mrb[0].mxu0
    %v315 = vadd.f32 %v65, %v314
    %v316 = vpop.f32.mrb[0].mxu0
    %317 = vmatprep.mubr.f32.mxu0 0.0
    %318 = vmatmul.mubr.f32.gmra.mrb[0].mxu0 %v122
    %v319 = vpop.f32.mrb[0].mxu0
    %v320 = vadd.f32 %v65, %v319
    %v321 = vpop.f32.mrb[0].mxu0
    %322 = vmatprep.mubr.f32.mxu0 0.0
    %323 = vmatmul.mubr.f32.gmra.mrb[0].mxu0 %v125
    %v324 = vpop.f32.mrb[0].mxu0
    %v325 = vadd.f32 %v65, %v324
    %v326 = vpop.f32.mrb[0].mxu0
    %327 = vmatprep.mubr.f32.mxu0 0.0
    %328 = vmatmul.mubr.f32.gmra.mrb[0].mxu0 %v128
    %v329 = vpop.f32.mrb[0].mxu0
    %v330 = vadd.f32 %v65, %v329
    %v331 = vpop.f32.mrb[0].mxu0
    %332 = vmatprep.mubr.f32.mxu0 0.0
    %333 = vmatmul.mubr.f32.gmra.mrb[0].mxu0 %v131
    %v334 = vpop.f32.mrb[0].mxu0
    %v335 = vadd.f32 %v65, %v334
    %v336 = vpop.f32.mrb[0].mxu0
    %337 = vmatprep.mubr.f32.mxu0 0.0
    %338 = vmatmul.mubr.f32.gmra.mrb[0].mxu0 %v134
    %v339 = vpop.f32.mrb[0].mxu0
    %v340 = vadd.f32 %v65, %v339
    %v341 = vpop.f32.mrb[0].mxu0
    %342 = vmatprep.mubr.f32.mxu0 0.0
    %343 = vmatmul.mubr.f32.gmra.mrb[0].mxu0 %v137
    %v344 = vpop.f32.mrb[0].mxu0
    %v345 = vadd.f32 %v65, %v344
    %v346 = vpop.f32.mrb[0].mxu0
    %347 = vmatprep.mubr.f32.mxu0 0.0
    %348 = vmatmul.mubr.f32.gmra.mrb[0].mxu0 %v140
    %v349 = vpop.f32.mrb[0].mxu0
    %v350 = vadd.f32 %v65, %v349
    %v351 = vpop.f32.mrb[0].mxu0
    %352 = vmatprep.mubr.f32.mxu0 0.0
    %353 = vmatmul.mubr.f32.gmra.mrb[0].mxu0 %v143
    %v354 = vpop.f32.mrb[0].mxu0
    %v355 = vadd.f32 %v65, %v354
    %v356 = vpop.f32.mrb[0].mxu0
    %357 = vmatprep.mubr.f32.mxu0 0.0
    %358 = vmatmul.mubr.f32.gmra.mrb[0].mxu0 %v146
    %v359 = vpop.f32.mrb[0].mxu0
    %v360 = vadd.f32 %v65, %v359
    %v361 = vpop.f32.mrb[0].mxu0
    %362 = vmatprep.mubr.f32.mxu0 0.0
    %363 = vmatmul.mubr.f32.gmra.mrb[0].mxu0 %v149
    %v364 = vpop.f32.mrb[0].mxu0
    %v365 = vadd.f32 %v65, %v364
    %v366 = vpop.f32.mrb[0].mxu0
    %367 = vmatprep.mubr.f32.mxu0 0.0
    %368 = vmatmul.mubr.f32.gmra.mrb[0].mxu0 %v152
    %v369 = vpop.f32.mrb[0].mxu0
    %v370 = vadd.f32 %v65, %v369
    %v371 = vpop.f32.mrb[0].mxu0
    %372 = vmatprep.mubr.f32.mxu0 0.0
    %373 = vmatmul.mubr.f32.gmra.mrb[0].mxu0 %v155
    %v374 = vpop.f32.mrb[0].mxu0
    %v375 = vadd.f32 %v65, %v374
    %v376 = vpop.f32.mrb[0].mxu0
    %377 = vmatprep.mubr.f32.mxu0 0.0
    %378 = vmatmul.mubr.f32.gmra.mrb[0].mxu0 %v158
    %v379 = vpop.f32.mrb[0].mxu0
    %v380 = vadd.f32 %v65, %v379
    %v381 = vpop.f32.mrb[0].mxu0
    %382 = vmatprep.mubr.f32.mxu0 0.0
    %383 = vmatmul.mubr.f32.gmra.mrb[0].mxu0 %v161
    %v384 = vpop.f32.mrb[0].mxu0
    %v385 = vadd.f32 %v65, %v384
    %v386 = vpop.f32.mrb[0].mxu0
    %387 = vdwg.mxu0
    %vm388 = vcmask 523264
    %v389 = vsel %vm388, %v230, 0.0
    %390 = vadd.xlane.f32.xlu0 %v389
    %v391 = vpop.xlane.xlu0 %390
    %v392 = vsel %vm388, %v235, 0.0
    %393 = vadd.xlane.f32.xlu0 %v392
    %v394 = vpop.xlane.xlu0 %393
    %v395 = vsel %vm388, %v240, 0.0
    %396 = vadd.xlane.f32.xlu0 %v395
    %v397 = vpop.xlane.xlu0 %396
    %v398 = vsel %vm388, %v245, 0.0
    %399 = vadd.xlane.f32.xlu0 %v398
    %v400 = vpop.xlane.xlu0 %399
    %v401 = vsel %vm388, %v250, 0.0
    %402 = vadd.xlane.f32.xlu0 %v401
    %v403 = vpop.xlane.xlu0 %402
    %v404 = vsel %vm388, %v255, 0.0
    %405 = vadd.xlane.f32.xlu0 %v404
    %v406 = vpop.xlane.xlu0 %405
    %v407 = vsel %vm388, %v260, 0.0
    %408 = vadd.xlane.f32.xlu0 %v407
    %v409 = vpop.xlane.xlu0 %408
    %v410 = vsel %vm388, %v265, 0.0
    %411 = vadd.xlane.f32.xlu0 %v410
    %v412 = vpop.xlane.xlu0 %411
    %v413 = vsel %vm388, %v270, 0.0
    %414 = vadd.xlane.f32.xlu0 %v413
    %v415 = vpop.xlane.xlu0 %414
    %v416 = vsel %vm388, %v275, 0.0
    %417 = vadd.xlane.f32.xlu0 %v416
    %v418 = vpop.xlane.xlu0 %417
    %v419 = vsel %vm388, %v280, 0.0
    %420 = vadd.xlane.f32.xlu0 %v419
    %v421 = vpop.xlane.xlu0 %420
    %v422 = vsel %vm388, %v285, 0.0
    %423 = vadd.xlane.f32.xlu0 %v422
    %v424 = vpop.xlane.xlu0 %423
    %v425 = vsel %vm388, %v290, 0.0
    %426 = vadd.xlane.f32.xlu0 %v425
    %v427 = vpop.xlane.xlu0 %426
    %v428 = vsel %vm388, %v295, 0.0
    %429 = vadd.xlane.f32.xlu0 %v428
    %v430 = vpop.xlane.xlu0 %429
    %v431 = vsel %vm388, %v300, 0.0
    %432 = vadd.xlane.f32.xlu0 %v431
    %v433 = vpop.xlane.xlu0 %432
    %v434 = vsel %vm388, %v305, 0.0
    %435 = vadd.xlane.f32.xlu0 %v434
    %v436 = vpop.xlane.xlu0 %435
    %v437 = vsel %vm388, %v310, 0.0
    %438 = vadd.xlane.f32.xlu0 %v437
    %v439 = vpop.xlane.xlu0 %438
    %v440 = vsel %vm388, %v315, 0.0
    %441 = vadd.xlane.f32.xlu0 %v440
    %v442 = vpop.xlane.xlu0 %441
    %v443 = vsel %vm388, %v320, 0.0
    %444 = vadd.xlane.f32.xlu0 %v443
    %v445 = vpop.xlane.xlu0 %444
    %v446 = vsel %vm388, %v325, 0.0
    %447 = vadd.xlane.f32.xlu0 %v446
    %v448 = vpop.xlane.xlu0 %447
    %v449 = vsel %vm388, %v330, 0.0
    %450 = vadd.xlane.f32.xlu0 %v449
    %v451 = vpop.xlane.xlu0 %450
    %v452 = vsel %vm388, %v335, 0.0
    %453 = vadd.xlane.f32.xlu0 %v452
    %v454 = vpop.xlane.xlu0 %453
    %v455 = vsel %vm388, %v340, 0.0
    %456 = vadd.xlane.f32.xlu0 %v455
    %v457 = vpop.xlane.xlu0 %456
    %v458 = vsel %vm388, %v345, 0.0
    %459 = vadd.xlane.f32.xlu0 %v458
    %v460 = vpop.xlane.xlu0 %459
    %v461 = vsel %vm388, %v350, 0.0
    %462 = vadd.xlane.f32.xlu0 %v461
    %v463 = vpop.xlane.xlu0 %462
    %v464 = vsel %vm388, %v355, 0.0
    %465 = vadd.xlane.f32.xlu0 %v464
    %v466 = vpop.xlane.xlu0 %465
    %v467 = vsel %vm388, %v360, 0.0
    %468 = vadd.xlane.f32.xlu0 %v467
    %v469 = vpop.xlane.xlu0 %468
    %v470 = vsel %vm388, %v365, 0.0
    %471 = vadd.xlane.f32.xlu0 %v470
    %v472 = vpop.xlane.xlu0 %471
    %v473 = vsel %vm388, %v370, 0.0
    %474 = vadd.xlane.f32.xlu0 %v473
    %v475 = vpop.xlane.xlu0 %474
    %v476 = vsel %vm388, %v375, 0.0
    %477 = vadd.xlane.f32.xlu0 %v476
    %v478 = vpop.xlane.xlu0 %477
    %v479 = vsel %vm388, %v380, 0.0
    %480 = vadd.xlane.f32.xlu0 %v479
    %v481 = vpop.xlane.xlu0 %480
    %v482 = vsel %vm388, %v385, 0.0
    %483 = vadd.xlane.f32.xlu0 %v482
    %v484 = vpop.xlane.xlu0 %483
    %v485 = vrcp.pop 64.0
    %v486 = vmul.f32 %v391, %v485
    %v487 = vmul.f32 %v394, %v485
    %v488 = vmul.f32 %v397, %v485
    %v489 = vmul.f32 %v400, %v485
    %v490 = vmul.f32 %v403, %v485
    %v491 = vmul.f32 %v406, %v485
    %v492 = vmul.f32 %v409, %v485
    %v493 = vmul.f32 %v412, %v485
    %v494 = vmul.f32 %v415, %v485
    %v495 = vmul.f32 %v418, %v485
    %v496 = vmul.f32 %v421, %v485
    %v497 = vmul.f32 %v424, %v485
    %v498 = vmul.f32 %v427, %v485
    %v499 = vmul.f32 %v430, %v485
    %v500 = vmul.f32 %v433, %v485
    %v501 = vmul.f32 %v436, %v485
    %v502 = vmul.f32 %v439, %v485
    %v503 = vmul.f32 %v442, %v485
    %v504 = vmul.f32 %v445, %v485
    %v505 = vmul.f32 %v448, %v485
    %v506 = vmul.f32 %v451, %v485
    %v507 = vmul.f32 %v454, %v485
    %v508 = vmul.f32 %v457, %v485
    %v509 = vmul.f32 %v460, %v485
    %v510 = vmul.f32 %v463, %v485
    %v511 = vmul.f32 %v466, %v485
    %v512 = vmul.f32 %v469, %v485
    %v513 = vmul.f32 %v472, %v485
    %v514 = vmul.f32 %v475, %v485
    %v515 = vmul.f32 %v478, %v485
    %v516 = vmul.f32 %v481, %v485
    %v517 = vmul.f32 %v484, %v485
    %v518 = vsub.f32 %v230, %v486
    %v519 = vsub.f32 %v235, %v487
    %v520 = vsub.f32 %v240, %v488
    %v521 = vsub.f32 %v245, %v489
    %v522 = vsub.f32 %v250, %v490
    %v523 = vsub.f32 %v255, %v491
    %v524 = vsub.f32 %v260, %v492
    %v525 = vsub.f32 %v265, %v493
    %v526 = vsub.f32 %v270, %v494
    %v527 = vsub.f32 %v275, %v495
    %v528 = vsub.f32 %v280, %v496
    %v529 = vsub.f32 %v285, %v497
    %v530 = vsub.f32 %v290, %v498
    %v531 = vsub.f32 %v295, %v499
    %v532 = vsub.f32 %v300, %v500
    %v533 = vsub.f32 %v305, %v501
    %v534 = vsub.f32 %v310, %v502
    %v535 = vsub.f32 %v315, %v503
    %v536 = vsub.f32 %v320, %v504
    %v537 = vsub.f32 %v325, %v505
    %v538 = vsub.f32 %v330, %v506
    %v539 = vsub.f32 %v335, %v507
    %v540 = vsub.f32 %v340, %v508
    %v541 = vsub.f32 %v345, %v509
    %v542 = vsub.f32 %v350, %v510
    %v543 = vsub.f32 %v355, %v511
    %v544 = vsub.f32 %v360, %v512
    %v545 = vsub.f32 %v365, %v513
    %v546 = vsub.f32 %v370, %v514
    %v547 = vsub.f32 %v375, %v515
    %v548 = vsub.f32 %v380, %v516
    %v549 = vsub.f32 %v385, %v517
    %v550 = vmul.f32 %v518, %v518
    %v551 = vmul.f32 %v519, %v519
    %v552 = vmul.f32 %v520, %v520
    %v553 = vmul.f32 %v521, %v521
    %v554 = vmul.f32 %v522, %v522
    %v555 = vmul.f32 %v523, %v523
    %v556 = vmul.f32 %v524, %v524
    %v557 = vmul.f32 %v525, %v525
    %v558 = vmul.f32 %v526, %v526
    %v559 = vmul.f32 %v527, %v527
    %v560 = vmul.f32 %v528, %v528
    %v561 = vmul.f32 %v529, %v529
    %v562 = vmul.f32 %v530, %v530
    %v563 = vmul.f32 %v531, %v531
    %v564 = vmul.f32 %v532, %v532
    %v565 = vmul.f32 %v533, %v533
    %v566 = vmul.f32 %v534, %v534
    %v567 = vmul.f32 %v535, %v535
    %v568 = vmul.f32 %v536, %v536
    %v569 = vmul.f32 %v537, %v537
    %v570 = vmul.f32 %v538, %v538
    %v571 = vmul.f32 %v539, %v539
    %v572 = vmul.f32 %v540, %v540
    %v573 = vmul.f32 %v541, %v541
    %v574 = vmul.f32 %v542, %v542
    %v575 = vmul.f32 %v543, %v543
    %v576 = vmul.f32 %v544, %v544
    %v577 = vmul.f32 %v545, %v545
    %v578 = vmul.f32 %v546, %v546
    %v579 = vmul.f32 %v547, %v547
    %v580 = vmul.f32 %v548, %v548
    %v581 = vmul.f32 %v549, %v549
    %v582 = vsel %vm388, %v550, 0.0
    %583 = vadd.xlane.f32.xlu0 %v582
    %v584 = vpop.xlane.xlu0 %583
    %v585 = vsel %vm388, %v551, 0.0
    %586 = vadd.xlane.f32.xlu0 %v585
    %v587 = vpop.xlane.xlu0 %586
    %v588 = vsel %vm388, %v552, 0.0
    %589 = vadd.xlane.f32.xlu0 %v588
    %v590 = vpop.xlane.xlu0 %589
    %v591 = vsel %vm388, %v553, 0.0
    %592 = vadd.xlane.f32.xlu0 %v591
    %v593 = vpop.xlane.xlu0 %592
    %v594 = vsel %vm388, %v554, 0.0
    %595 = vadd.xlane.f32.xlu0 %v594
    %v596 = vpop.xlane.xlu0 %595
    %v597 = vsel %vm388, %v555, 0.0
    %598 = vadd.xlane.f32.xlu0 %v597
    %v599 = vpop.xlane.xlu0 %598
    %v600 = vsel %vm388, %v556, 0.0
    %601 = vadd.xlane.f32.xlu0 %v600
    %v602 = vpop.xlane.xlu0 %601
    %v603 = vsel %vm388, %v557, 0.0
    %604 = vadd.xlane.f32.xlu0 %v603
    %v605 = vpop.xlane.xlu0 %604
    %v606 = vsel %vm388, %v558, 0.0
    %607 = vadd.xlane.f32.xlu0 %v606
    %v608 = vpop.xlane.xlu0 %607
    %v609 = vsel %vm388, %v559, 0.0
    %610 = vadd.xlane.f32.xlu0 %v609
    %v611 = vpop.xlane.xlu0 %610
    %v612 = vsel %vm388, %v560, 0.0
    %613 = vadd.xlane.f32.xlu0 %v612
    %v614 = vpop.xlane.xlu0 %613
    %v615 = vsel %vm388, %v561, 0.0
    %616 = vadd.xlane.f32.xlu0 %v615
    %v617 = vpop.xlane.xlu0 %616
    %v618 = vsel %vm388, %v562, 0.0
    %619 = vadd.xlane.f32.xlu0 %v618
    %v620 = vpop.xlane.xlu0 %619
    %v621 = vsel %vm388, %v563, 0.0
    %622 = vadd.xlane.f32.xlu0 %v621
    %v623 = vpop.xlane.xlu0 %622
    %v624 = vsel %vm388, %v564, 0.0
    %625 = vadd.xlane.f32.xlu0 %v624
    %v626 = vpop.xlane.xlu0 %625
    %v627 = vsel %vm388, %v565, 0.0
    %628 = vadd.xlane.f32.xlu0 %v627
    %v629 = vpop.xlane.xlu0 %628
    %v630 = vsel %vm388, %v566, 0.0
    %631 = vadd.xlane.f32.xlu0 %v630
    %v632 = vpop.xlane.xlu0 %631
    %v633 = vsel %vm388, %v567, 0.0
    %634 = vadd.xlane.f32.xlu0 %v633
    %v635 = vpop.xlane.xlu0 %634
    %v636 = vsel %vm388, %v568, 0.0
    %637 = vadd.xlane.f32.xlu0 %v636
    %v638 = vpop.xlane.xlu0 %637
    %v639 = vsel %vm388, %v569, 0.0
    %640 = vadd.xlane.f32.xlu0 %v639
    %v641 = vpop.xlane.xlu0 %640
    %v642 = vsel %vm388, %v570, 0.0
    %643 = vadd.xlane.f32.xlu0 %v642
    %v644 = vpop.xlane.xlu0 %643
    %v645 = vsel %vm388, %v571, 0.0
    %646 = vadd.xlane.f32.xlu0 %v645
    %v647 = vpop.xlane.xlu0 %646
    %v648 = vsel %vm388, %v572, 0.0
    %649 = vadd.xlane.f32.xlu0 %v648
    %v650 = vpop.xlane.xlu0 %649
    %v651 = vsel %vm388, %v573, 0.0
    %652 = vadd.xlane.f32.xlu0 %v651
    %v653 = vpop.xlane.xlu0 %652
    %v654 = vsel %vm388, %v574, 0.0
    %655 = vadd.xlane.f32.xlu0 %v654
    %v656 = vpop.xlane.xlu0 %655
    %v657 = vsel %vm388, %v575, 0.0
    %658 = vadd.xlane.f32.xlu0 %v657
    %v659 = vpop.xlane.xlu0 %658
    %v660 = vsel %vm388, %v576, 0.0
    %661 = vadd.xlane.f32.xlu0 %v660
    %v662 = vpop.xlane.xlu0 %661
    %v663 = vsel %vm388, %v577, 0.0
    %664 = vadd.xlane.f32.xlu0 %v663
    %v665 = vpop.xlane.xlu0 %664
    %v666 = vsel %vm388, %v578, 0.0
    %667 = vadd.xlane.f32.xlu0 %v666
    %v668 = vpop.xlane.xlu0 %667
    %v669 = vsel %vm388, %v579, 0.0
    %670 = vadd.xlane.f32.xlu0 %v669
    %v671 = vpop.xlane.xlu0 %670
    %v672 = vsel %vm388, %v580, 0.0
    %673 = vadd.xlane.f32.xlu0 %v672
    %v674 = vpop.xlane.xlu0 %673
    %v675 = vsel %vm388, %v581, 0.0
    %676 = vadd.xlane.f32.xlu0 %v675
    %v677 = vpop.xlane.xlu0 %676
    %v678 = vmul.f32 %v584, %v485
    %v679 = vmul.f32 %v587, %v485
    %v680 = vmul.f32 %v590, %v485
    %v681 = vmul.f32 %v593, %v485
    %v682 = vmul.f32 %v596, %v485
    %v683 = vmul.f32 %v599, %v485
    %v684 = vmul.f32 %v602, %v485
    %v685 = vmul.f32 %v605, %v485
    %v686 = vmul.f32 %v608, %v485
    %v687 = vmul.f32 %v611, %v485
    %v688 = vmul.f32 %v614, %v485
    %v689 = vmul.f32 %v617, %v485
    %v690 = vmul.f32 %v620, %v485
    %v691 = vmul.f32 %v623, %v485
    %v692 = vmul.f32 %v626, %v485
    %v693 = vmul.f32 %v629, %v485
    %v694 = vmul.f32 %v632, %v485
    %v695 = vmul.f32 %v635, %v485
    %v696 = vmul.f32 %v638, %v485
    %v697 = vmul.f32 %v641, %v485
    %v698 = vmul.f32 %v644, %v485
    %v699 = vmul.f32 %v647, %v485
    %v700 = vmul.f32 %v650, %v485
    %v701 = vmul.f32 %v653, %v485
    %v702 = vmul.f32 %v656, %v485
    %v703 = vmul.f32 %v659, %v485
    %v704 = vmul.f32 %v662, %v485
    %v705 = vmul.f32 %v665, %v485
    %v706 = vmul.f32 %v668, %v485
    %v707 = vmul.f32 %v671, %v485
    %v708 = vmul.f32 %v674, %v485
    %v709 = vmul.f32 %v677, %v485
    %v710 = vadd.f32 %v678, 1e-05
    %v711 = vadd.f32 %v679, 1e-05
    %v712 = vadd.f32 %v680, 1e-05
    %v713 = vadd.f32 %v681, 1e-05
    %v714 = vadd.f32 %v682, 1e-05
    %v715 = vadd.f32 %v683, 1e-05
    %v716 = vadd.f32 %v684, 1e-05
    %v717 = vadd.f32 %v685, 1e-05
    %v718 = vadd.f32 %v686, 1e-05
    %v719 = vadd.f32 %v687, 1e-05
    %v720 = vadd.f32 %v688, 1e-05
    %v721 = vadd.f32 %v689, 1e-05
    %v722 = vadd.f32 %v690, 1e-05
    %v723 = vadd.f32 %v691, 1e-05
    %v724 = vadd.f32 %v692, 1e-05
    %v725 = vadd.f32 %v693, 1e-05
    %v726 = vadd.f32 %v694, 1e-05
    %v727 = vadd.f32 %v695, 1e-05
    %v728 = vadd.f32 %v696, 1e-05
    %v729 = vadd.f32 %v697, 1e-05
    %v730 = vadd.f32 %v698, 1e-05
    %v731 = vadd.f32 %v699, 1e-05
    %v732 = vadd.f32 %v700, 1e-05
    %v733 = vadd.f32 %v701, 1e-05
    %v734 = vadd.f32 %v702, 1e-05
    %v735 = vadd.f32 %v703, 1e-05
    %v736 = vadd.f32 %v704, 1e-05
    %v737 = vadd.f32 %v705, 1e-05
    %v738 = vadd.f32 %v706, 1e-05
    %v739 = vadd.f32 %v707, 1e-05
    %v740 = vadd.f32 %v708, 1e-05
    %v741 = vadd.f32 %v709, 1e-05
    %v742 = vrsqrt.pop %v710
    %v743 = vrsqrt.pop %v711
    %v744 = vrsqrt.pop %v712
    %v745 = vrsqrt.pop %v713
    %v746 = vrsqrt.pop %v714
    %v747 = vrsqrt.pop %v715
    %v748 = vrsqrt.pop %v716
    %v749 = vrsqrt.pop %v717
    %v750 = vrsqrt.pop %v718
    %v751 = vrsqrt.pop %v719
    %v752 = vrsqrt.pop %v720
    %v753 = vrsqrt.pop %v721
    %v754 = vrsqrt.pop %v722
    %v755 = vrsqrt.pop %v723
    %v756 = vrsqrt.pop %v724
    %v757 = vrsqrt.pop %v725
    %v758 = vrsqrt.pop %v726
    %v759 = vrsqrt.pop %v727
    %v760 = vrsqrt.pop %v728
    %v761 = vrsqrt.pop %v729
    %v762 = vrsqrt.pop %v730
    %v763 = vrsqrt.pop %v731
    %v764 = vrsqrt.pop %v732
    %v765 = vrsqrt.pop %v733
    %v766 = vrsqrt.pop %v734
    %v767 = vrsqrt.pop %v735
    %v768 = vrsqrt.pop %v736
    %v769 = vrsqrt.pop %v737
    %v770 = vrsqrt.pop %v738
    %v771 = vrsqrt.pop %v739
    %v772 = vrsqrt.pop %v740
    %v773 = vrsqrt.pop %v741
    %v774 = vmul.f32 %v518, %v742
    %v775 = vmul.f32 %v519, %v743
    %v776 = vmul.f32 %v520, %v744
    %v777 = vmul.f32 %v521, %v745
    %v778 = vmul.f32 %v522, %v746
    %v779 = vmul.f32 %v523, %v747
    %v780 = vmul.f32 %v524, %v748
    %v781 = vmul.f32 %v525, %v749
    %v782 = vmul.f32 %v526, %v750
    %v783 = vmul.f32 %v527, %v751
    %v784 = vmul.f32 %v528, %v752
    %v785 = vmul.f32 %v529, %v753
    %v786 = vmul.f32 %v530, %v754
    %v787 = vmul.f32 %v531, %v755
    %v788 = vmul.f32 %v532, %v756
    %v789 = vmul.f32 %v533, %v757
    %v790 = vmul.f32 %v534, %v758
    %v791 = vmul.f32 %v535, %v759
    %v792 = vmul.f32 %v536, %v760
    %v793 = vmul.f32 %v537, %v761
    %v794 = vmul.f32 %v538, %v762
    %v795 = vmul.f32 %v539, %v763
    %v796 = vmul.f32 %v540, %v764
    %v797 = vmul.f32 %v541, %v765
    %v798 = vmul.f32 %v542, %v766
    %v799 = vmul.f32 %v543, %v767
    %v800 = vmul.f32 %v544, %v768
    %v801 = vmul.f32 %v545, %v769
    %v802 = vmul.f32 %v546, %v770
    %v803 = vmul.f32 %v547, %v771
    %v804 = vmul.f32 %v548, %v772
    %v805 = vmul.f32 %v549, %v773
    %v806 = vlaneseq
    %v807 = vshrl.u32 %v806, 7
    %v808 = vsub.s32 1, %v807
    %v809 = vrot.slane %v24, %v808
    %v810 = vmul.f32 %v774, %v809
    %v811 = vmul.f32 %v775, %v809
    %v812 = vmul.f32 %v776, %v809
    %v813 = vmul.f32 %v777, %v809
    %v814 = vmul.f32 %v778, %v809
    %v815 = vmul.f32 %v779, %v809
    %v816 = vmul.f32 %v780, %v809
    %v817 = vmul.f32 %v781, %v809
    %v818 = vmul.f32 %v782, %v809
    %v819 = vmul.f32 %v783, %v809
    %v820 = vmul.f32 %v784, %v809
    %v821 = vmul.f32 %v785, %v809
    %v822 = vmul.f32 %v786, %v809
    %v823 = vmul.f32 %v787, %v809
    %v824 = vmul.f32 %v788, %v809
    %v825 = vmul.f32 %v789, %v809
    %v826 = vmul.f32 %v790, %v809
    %v827 = vmul.f32 %v791, %v809
    %v828 = vmul.f32 %v792, %v809
    %v829 = vmul.f32 %v793, %v809
    %v830 = vmul.f32 %v794, %v809
    %v831 = vmul.f32 %v795, %v809
    %v832 = vmul.f32 %v796, %v809
    %v833 = vmul.f32 %v797, %v809
    %v834 = vmul.f32 %v798, %v809
    %v835 = vmul.f32 %v799, %v809
    %v836 = vmul.f32 %v800, %v809
    %v837 = vmul.f32 %v801, %v809
    %v838 = vmul.f32 %v802, %v809
    %v839 = vmul.f32 %v803, %v809
    %v840 = vmul.f32 %v804, %v809
    %v841 = vmul.f32 %v805, %v809
    %v842 = vlaneseq
    %v843 = vshrl.u32 %v842, 7
    %v844 = vsub.s32 2, %v843
    %v845 = vrot.slane %v24, %v844
    %v846 = vadd.f32 %v810, %v845
    %v847 = vadd.f32 %v811, %v845
    %v848 = vadd.f32 %v812, %v845
    %v849 = vadd.f32 %v813, %v845
    %v850 = vadd.f32 %v814, %v845
    %v851 = vadd.f32 %v815, %v845
    %v852 = vadd.f32 %v816, %v845
    %v853 = vadd.f32 %v817, %v845
    %v854 = vadd.f32 %v818, %v845
    %v855 = vadd.f32 %v819, %v845
    %v856 = vadd.f32 %v820, %v845
    %v857 = vadd.f32 %v821, %v845
    %v858 = vadd.f32 %v822, %v845
    %v859 = vadd.f32 %v823, %v845
    %v860 = vadd.f32 %v824, %v845
    %v861 = vadd.f32 %v825, %v845
    %v862 = vadd.f32 %v826, %v845
    %v863 = vadd.f32 %v827, %v845
    %v864 = vadd.f32 %v828, %v845
    %v865 = vadd.f32 %v829, %v845
    %v866 = vadd.f32 %v830, %v845
    %v867 = vadd.f32 %v831, %v845
    %v868 = vadd.f32 %v832, %v845
    %v869 = vadd.f32 %v833, %v845
    %v870 = vadd.f32 %v834, %v845
    %v871 = vadd.f32 %v835, %v845
    %v872 = vadd.f32 %v836, %v845
    %v873 = vadd.f32 %v837, %v845
    %v874 = vadd.f32 %v838, %v845
    %v875 = vadd.f32 %v839, %v845
    %v876 = vadd.f32 %v840, %v845
    %v877 = vadd.f32 %v841, %v845
    %v878 = vmax.f32 %v846, 0.0
    %v879 = vmax.f32 %v847, 0.0
    %v880 = vmax.f32 %v848, 0.0
    %v881 = vmax.f32 %v849, 0.0
    %v882 = vmax.f32 %v850, 0.0
    %v883 = vmax.f32 %v851, 0.0
    %v884 = vmax.f32 %v852, 0.0
    %v885 = vmax.f32 %v853, 0.0
    %v886 = vmax.f32 %v854, 0.0
    %v887 = vmax.f32 %v855, 0.0
    %v888 = vmax.f32 %v856, 0.0
    %v889 = vmax.f32 %v857, 0.0
    %v890 = vmax.f32 %v858, 0.0
    %v891 = vmax.f32 %v859, 0.0
    %v892 = vmax.f32 %v860, 0.0
    %v893 = vmax.f32 %v861, 0.0
    %v894 = vmax.f32 %v862, 0.0
    %v895 = vmax.f32 %v863, 0.0
    %v896 = vmax.f32 %v864, 0.0
    %v897 = vmax.f32 %v865, 0.0
    %v898 = vmax.f32 %v866, 0.0
    %v899 = vmax.f32 %v867, 0.0
    %v900 = vmax.f32 %v868, 0.0
    %v901 = vmax.f32 %v869, 0.0
    %v902 = vmax.f32 %v870, 0.0
    %v903 = vmax.f32 %v871, 0.0
    %v904 = vmax.f32 %v872, 0.0
    %v905 = vmax.f32 %v873, 0.0
    %v906 = vmax.f32 %v874, 0.0
    %v907 = vmax.f32 %v875, 0.0
    %v908 = vmax.f32 %v876, 0.0
    %v909 = vmax.f32 %v877, 0.0
    %v910 = vld [vmem:[%s4] sm:$0xff]
    %v911 = vld [vmem:[%s4 + $0x8] sm:$0xff]
    %v912 = vld [vmem:[%s4 + $0x10] sm:$0xff]
    %v913 = vld [vmem:[%s4 + $0x18] sm:$0xff]
    %v914 = vld [vmem:[%s4 + $0x20] sm:$0xff]
    %v915 = vld [vmem:[%s4 + $0x28] sm:$0xff]
    %v916 = vld [vmem:[%s4 + $0x30] sm:$0xff]
    %v917 = vld [vmem:[%s4 + $0x38] sm:$0xff]
    %v918 = vlaneseq
    %v919 = vshrl.u32 %v918, 7
    %v920 = vsub.s32 3, %v919
    %v921 = vrot.slane %v24, %v920
    %v923 = vsel %vm388, %v878, 0
    %v926 = vsel %vm388, %v879, 0
    %v929 = vsel %vm388, %v880, 0
    %v932 = vsel %vm388, %v881, 0
    %v935 = vsel %vm388, %v882, 0
    %v938 = vsel %vm388, %v883, 0
    %v941 = vsel %vm388, %v884, 0
    %v944 = vsel %vm388, %v885, 0
    %v947 = vsel %vm388, %v886, 0
    %v950 = vsel %vm388, %v887, 0
    %v953 = vsel %vm388, %v888, 0
    %v956 = vsel %vm388, %v889, 0
    %v959 = vsel %vm388, %v890, 0
    %v962 = vsel %vm388, %v891, 0
    %v965 = vsel %vm388, %v892, 0
    %v968 = vsel %vm388, %v893, 0
    %v971 = vsel %vm388, %v894, 0
    %v974 = vsel %vm388, %v895, 0
    %v977 = vsel %vm388, %v896, 0
    %v980 = vsel %vm388, %v897, 0
    %v983 = vsel %vm388, %v898, 0
    %v986 = vsel %vm388, %v899, 0
    %v989 = vsel %vm388, %v900, 0
    %v992 = vsel %vm388, %v901, 0
    %v995 = vsel %vm388, %v902, 0
    %v998 = vsel %vm388, %v903, 0
    %v1001 = vsel %vm388, %v904, 0
    %v1004 = vsel %vm388, %v905, 0
    %v1007 = vsel %vm388, %v906, 0
    %v1010 = vsel %vm388, %v907, 0
    %v1013 = vsel %vm388, %v908, 0
    %v1016 = vsel %vm388, %v909, 0
    %1018 = vmatprep.subr.mxu0 0.0
    %1019 = vmatpush1.msra.mxu0 %v910
    %1020 = vmatprep.subr.mxu0 0.0
    %1021 = vmatpush1.msra.mxu0 %v911
    %1022 = vmatprep.subr.mxu0 0.0
    %1023 = vmatpush1.msra.mxu0 %v912
    %1024 = vmatprep.subr.mxu0 0.0
    %1025 = vmatpush1.msra.mxu0 %v913
    %1026 = vmatprep.subr.mxu0 0.0
    %1027 = vmatpush1.msra.mxu0 %v914
    %1028 = vmatprep.subr.mxu0 0.0
    %1029 = vmatpush1.msra.mxu0 %v915
    %1030 = vmatprep.subr.mxu0 0.0
    %1031 = vmatpush1.msra.mxu0 %v916
    %1032 = vmatprep.subr.mxu0 0.0
    %1033 = vmatpush1.msra.mxu0 %v917
    %1034 = vmatprep.subr.mxu0 0.0
    %1035 = vmatpush1.msra.mxu0 0.0
    %1036 = vmatprep.subr.mxu0 0.0
    %1037 = vmatpush1.msra.mxu0 0.0
    %1038 = vmatprep.subr.mxu0 0.0
    %1039 = vmatpush1.msra.mxu0 0.0
    %1040 = vmatprep.subr.mxu0 0.0
    %1041 = vmatpush1.msra.mxu0 0.0
    %1042 = vmatprep.subr.mxu0 0.0
    %1043 = vmatpush1.msra.mxu0 0.0
    %1044 = vmatprep.subr.mxu0 0.0
    %1045 = vmatpush1.msra.mxu0 0.0
    %1046 = vmatprep.subr.mxu0 0.0
    %1047 = vmatpush1.msra.mxu0 0.0
    %1048 = vmatprep.subr.mxu0 0.0
    %1049 = vmatpush1.msra.mxu0 0.0
    %1050 = vmatprep.subr.mxu0 0.0
    %1051 = vmatpush1.msra.mxu0 0.0
    %1052 = vmatprep.subr.mxu0 0.0
    %1053 = vmatpush1.msra.mxu0 0.0
    %1054 = vmatprep.subr.mxu0 0.0
    %1055 = vmatpush1.msra.mxu0 0.0
    %1056 = vmatprep.subr.mxu0 0.0
    %1057 = vmatpush1.msra.mxu0 0.0
    %1058 = vmatprep.subr.mxu0 0.0
    %1059 = vmatpush1.msra.mxu0 0.0
    %1060 = vmatprep.subr.mxu0 0.0
    %1061 = vmatpush1.msra.mxu0 0.0
    %1062 = vmatprep.subr.mxu0 0.0
    %1063 = vmatpush1.msra.mxu0 0.0
    %1064 = vmatprep.subr.mxu0 0.0
    %1065 = vmatpush1.msra.mxu0 0.0
    %1066 = vmatprep.subr.mxu0 0.0
    %1067 = vmatpush1.msra.mxu0 0.0
    %1068 = vmatprep.subr.mxu0 0.0
    %1069 = vmatpush1.msra.mxu0 0.0
    %1070 = vmatprep.subr.mxu0 0.0
    %1071 = vmatpush1.msra.mxu0 0.0
    %1072 = vmatprep.subr.mxu0 0.0
    %1073 = vmatpush1.msra.mxu0 0.0
    %1074 = vmatprep.subr.mxu0 0.0
    %1075 = vmatpush1.msra.mxu0 0.0
    %1076 = vmatprep.subr.mxu0 0.0
    %1077 = vmatpush1.msra.mxu0 0.0
    %1078 = vmatprep.subr.mxu0 0.0
    %1079 = vmatpush1.msra.mxu0 0.0
    %1080 = vmatprep.subr.mxu0 0.0
    %1081 = vmatpush1.msra.mxu0 0.0
    %1082 = vmatprep.mubr.f32.mxu0 0.0
    %1083 = vmatmul.mubr.f32.gmra.mrb[0].mxu0 %v923
    %v1084 = vpop.f32.mrb[0].mxu0
    %v1085 = vadd.f32 %v921, %v1084
    %v1086 = vpop.f32.mrb[0].mxu0
    %1087 = vmatprep.mubr.f32.mxu0 0.0
    %1088 = vmatmul.mubr.f32.gmra.mrb[0].mxu0 %v926
    %v1089 = vpop.f32.mrb[0].mxu0
    %v1090 = vadd.f32 %v921, %v1089
    %v1091 = vpop.f32.mrb[0].mxu0
    %1092 = vmatprep.mubr.f32.mxu0 0.0
    %1093 = vmatmul.mubr.f32.gmra.mrb[0].mxu0 %v929
    %v1094 = vpop.f32.mrb[0].mxu0
    %v1095 = vadd.f32 %v921, %v1094
    %v1096 = vpop.f32.mrb[0].mxu0
    %1097 = vmatprep.mubr.f32.mxu0 0.0
    %1098 = vmatmul.mubr.f32.gmra.mrb[0].mxu0 %v932
    %v1099 = vpop.f32.mrb[0].mxu0
    %v1100 = vadd.f32 %v921, %v1099
    %v1101 = vpop.f32.mrb[0].mxu0
    %1102 = vmatprep.mubr.f32.mxu0 0.0
    %1103 = vmatmul.mubr.f32.gmra.mrb[0].mxu0 %v935
    %v1104 = vpop.f32.mrb[0].mxu0
    %v1105 = vadd.f32 %v921, %v1104
    %v1106 = vpop.f32.mrb[0].mxu0
    %1107 = vmatprep.mubr.f32.mxu0 0.0
    %1108 = vmatmul.mubr.f32.gmra.mrb[0].mxu0 %v938
    %v1109 = vpop.f32.mrb[0].mxu0
    %v1110 = vadd.f32 %v921, %v1109
    %v1111 = vpop.f32.mrb[0].mxu0
    %1112 = vmatprep.mubr.f32.mxu0 0.0
    %1113 = vmatmul.mubr.f32.gmra.mrb[0].mxu0 %v941
    %v1114 = vpop.f32.mrb[0].mxu0
    %v1115 = vadd.f32 %v921, %v1114
    %v1116 = vpop.f32.mrb[0].mxu0
    %1117 = vmatprep.mubr.f32.mxu0 0.0
    %1118 = vmatmul.mubr.f32.gmra.mrb[0].mxu0 %v944
    %v1119 = vpop.f32.mrb[0].mxu0
    %v1120 = vadd.f32 %v921, %v1119
    %v1121 = vpop.f32.mrb[0].mxu0
    %1122 = vmatprep.mubr.f32.mxu0 0.0
    %1123 = vmatmul.mubr.f32.gmra.mrb[0].mxu0 %v947
    %v1124 = vpop.f32.mrb[0].mxu0
    %v1125 = vadd.f32 %v921, %v1124
    %v1126 = vpop.f32.mrb[0].mxu0
    %1127 = vmatprep.mubr.f32.mxu0 0.0
    %1128 = vmatmul.mubr.f32.gmra.mrb[0].mxu0 %v950
    %v1129 = vpop.f32.mrb[0].mxu0
    %v1130 = vadd.f32 %v921, %v1129
    %v1131 = vpop.f32.mrb[0].mxu0
    %1132 = vmatprep.mubr.f32.mxu0 0.0
    %1133 = vmatmul.mubr.f32.gmra.mrb[0].mxu0 %v953
    %v1134 = vpop.f32.mrb[0].mxu0
    %v1135 = vadd.f32 %v921, %v1134
    %v1136 = vpop.f32.mrb[0].mxu0
    %1137 = vmatprep.mubr.f32.mxu0 0.0
    %1138 = vmatmul.mubr.f32.gmra.mrb[0].mxu0 %v956
    %v1139 = vpop.f32.mrb[0].mxu0
    %v1140 = vadd.f32 %v921, %v1139
    %v1141 = vpop.f32.mrb[0].mxu0
    %1142 = vmatprep.mubr.f32.mxu0 0.0
    %1143 = vmatmul.mubr.f32.gmra.mrb[0].mxu0 %v959
    %v1144 = vpop.f32.mrb[0].mxu0
    %v1145 = vadd.f32 %v921, %v1144
    %v1146 = vpop.f32.mrb[0].mxu0
    %1147 = vmatprep.mubr.f32.mxu0 0.0
    %1148 = vmatmul.mubr.f32.gmra.mrb[0].mxu0 %v962
    %v1149 = vpop.f32.mrb[0].mxu0
    %v1150 = vadd.f32 %v921, %v1149
    %v1151 = vpop.f32.mrb[0].mxu0
    %1152 = vmatprep.mubr.f32.mxu0 0.0
    %1153 = vmatmul.mubr.f32.gmra.mrb[0].mxu0 %v965
    %v1154 = vpop.f32.mrb[0].mxu0
    %v1155 = vadd.f32 %v921, %v1154
    %v1156 = vpop.f32.mrb[0].mxu0
    %1157 = vmatprep.mubr.f32.mxu0 0.0
    %1158 = vmatmul.mubr.f32.gmra.mrb[0].mxu0 %v968
    %v1159 = vpop.f32.mrb[0].mxu0
    %v1160 = vadd.f32 %v921, %v1159
    %v1161 = vpop.f32.mrb[0].mxu0
    %1162 = vmatprep.mubr.f32.mxu0 0.0
    %1163 = vmatmul.mubr.f32.gmra.mrb[0].mxu0 %v971
    %v1164 = vpop.f32.mrb[0].mxu0
    %v1165 = vadd.f32 %v921, %v1164
    %v1166 = vpop.f32.mrb[0].mxu0
    %1167 = vmatprep.mubr.f32.mxu0 0.0
    %1168 = vmatmul.mubr.f32.gmra.mrb[0].mxu0 %v974
    %v1169 = vpop.f32.mrb[0].mxu0
    %v1170 = vadd.f32 %v921, %v1169
    %v1171 = vpop.f32.mrb[0].mxu0
    %1172 = vmatprep.mubr.f32.mxu0 0.0
    %1173 = vmatmul.mubr.f32.gmra.mrb[0].mxu0 %v977
    %v1174 = vpop.f32.mrb[0].mxu0
    %v1175 = vadd.f32 %v921, %v1174
    %v1176 = vpop.f32.mrb[0].mxu0
    %1177 = vmatprep.mubr.f32.mxu0 0.0
    %1178 = vmatmul.mubr.f32.gmra.mrb[0].mxu0 %v980
    %v1179 = vpop.f32.mrb[0].mxu0
    %v1180 = vadd.f32 %v921, %v1179
    %v1181 = vpop.f32.mrb[0].mxu0
    %1182 = vmatprep.mubr.f32.mxu0 0.0
    %1183 = vmatmul.mubr.f32.gmra.mrb[0].mxu0 %v983
    %v1184 = vpop.f32.mrb[0].mxu0
    %v1185 = vadd.f32 %v921, %v1184
    %v1186 = vpop.f32.mrb[0].mxu0
    %1187 = vmatprep.mubr.f32.mxu0 0.0
    %1188 = vmatmul.mubr.f32.gmra.mrb[0].mxu0 %v986
    %v1189 = vpop.f32.mrb[0].mxu0
    %v1190 = vadd.f32 %v921, %v1189
    %v1191 = vpop.f32.mrb[0].mxu0
    %1192 = vmatprep.mubr.f32.mxu0 0.0
    %1193 = vmatmul.mubr.f32.gmra.mrb[0].mxu0 %v989
    %v1194 = vpop.f32.mrb[0].mxu0
    %v1195 = vadd.f32 %v921, %v1194
    %v1196 = vpop.f32.mrb[0].mxu0
    %1197 = vmatprep.mubr.f32.mxu0 0.0
    %1198 = vmatmul.mubr.f32.gmra.mrb[0].mxu0 %v992
    %v1199 = vpop.f32.mrb[0].mxu0
    %v1200 = vadd.f32 %v921, %v1199
    %v1201 = vpop.f32.mrb[0].mxu0
    %1202 = vmatprep.mubr.f32.mxu0 0.0
    %1203 = vmatmul.mubr.f32.gmra.mrb[0].mxu0 %v995
    %v1204 = vpop.f32.mrb[0].mxu0
    %v1205 = vadd.f32 %v921, %v1204
    %v1206 = vpop.f32.mrb[0].mxu0
    %1207 = vmatprep.mubr.f32.mxu0 0.0
    %1208 = vmatmul.mubr.f32.gmra.mrb[0].mxu0 %v998
    %v1209 = vpop.f32.mrb[0].mxu0
    %v1210 = vadd.f32 %v921, %v1209
    %v1211 = vpop.f32.mrb[0].mxu0
    %1212 = vmatprep.mubr.f32.mxu0 0.0
    %1213 = vmatmul.mubr.f32.gmra.mrb[0].mxu0 %v1001
    %v1214 = vpop.f32.mrb[0].mxu0
    %v1215 = vadd.f32 %v921, %v1214
    %v1216 = vpop.f32.mrb[0].mxu0
    %1217 = vmatprep.mubr.f32.mxu0 0.0
    %1218 = vmatmul.mubr.f32.gmra.mrb[0].mxu0 %v1004
    %v1219 = vpop.f32.mrb[0].mxu0
    %v1220 = vadd.f32 %v921, %v1219
    %v1221 = vpop.f32.mrb[0].mxu0
    %1222 = vmatprep.mubr.f32.mxu0 0.0
    %1223 = vmatmul.mubr.f32.gmra.mrb[0].mxu0 %v1007
    %v1224 = vpop.f32.mrb[0].mxu0
    %v1225 = vadd.f32 %v921, %v1224
    %v1226 = vpop.f32.mrb[0].mxu0
    %1227 = vmatprep.mubr.f32.mxu0 0.0
    %1228 = vmatmul.mubr.f32.gmra.mrb[0].mxu0 %v1010
    %v1229 = vpop.f32.mrb[0].mxu0
    %v1230 = vadd.f32 %v921, %v1229
    %v1231 = vpop.f32.mrb[0].mxu0
    %1232 = vmatprep.mubr.f32.mxu0 0.0
    %1233 = vmatmul.mubr.f32.gmra.mrb[0].mxu0 %v1013
    %v1234 = vpop.f32.mrb[0].mxu0
    %v1235 = vadd.f32 %v921, %v1234
    %v1236 = vpop.f32.mrb[0].mxu0
    %1237 = vmatprep.mubr.f32.mxu0 0.0
    %1238 = vmatmul.mubr.f32.gmra.mrb[0].mxu0 %v1016
    %v1239 = vpop.f32.mrb[0].mxu0
    %v1240 = vadd.f32 %v921, %v1239
    %v1241 = vpop.f32.mrb[0].mxu0
    %1242 = vdwg.mxu0
    %v1243 = vsel %vm66, %v1085, 0.0
    %1244 = vadd.xlane.f32.xlu0 %v1243
    %v1245 = vpop.xlane.xlu0 %1244
    %v1246 = vsel %vm66, %v1090, 0.0
    %1247 = vadd.xlane.f32.xlu0 %v1246
    %v1248 = vpop.xlane.xlu0 %1247
    %v1249 = vsel %vm66, %v1095, 0.0
    %1250 = vadd.xlane.f32.xlu0 %v1249
    %v1251 = vpop.xlane.xlu0 %1250
    %v1252 = vsel %vm66, %v1100, 0.0
    %1253 = vadd.xlane.f32.xlu0 %v1252
    %v1254 = vpop.xlane.xlu0 %1253
    %v1255 = vsel %vm66, %v1105, 0.0
    %1256 = vadd.xlane.f32.xlu0 %v1255
    %v1257 = vpop.xlane.xlu0 %1256
    %v1258 = vsel %vm66, %v1110, 0.0
    %1259 = vadd.xlane.f32.xlu0 %v1258
    %v1260 = vpop.xlane.xlu0 %1259
    %v1261 = vsel %vm66, %v1115, 0.0
    %1262 = vadd.xlane.f32.xlu0 %v1261
    %v1263 = vpop.xlane.xlu0 %1262
    %v1264 = vsel %vm66, %v1120, 0.0
    %1265 = vadd.xlane.f32.xlu0 %v1264
    %v1266 = vpop.xlane.xlu0 %1265
    %v1267 = vsel %vm66, %v1125, 0.0
    %1268 = vadd.xlane.f32.xlu0 %v1267
    %v1269 = vpop.xlane.xlu0 %1268
    %v1270 = vsel %vm66, %v1130, 0.0
    %1271 = vadd.xlane.f32.xlu0 %v1270
    %v1272 = vpop.xlane.xlu0 %1271
    %v1273 = vsel %vm66, %v1135, 0.0
    %1274 = vadd.xlane.f32.xlu0 %v1273
    %v1275 = vpop.xlane.xlu0 %1274
    %v1276 = vsel %vm66, %v1140, 0.0
    %1277 = vadd.xlane.f32.xlu0 %v1276
    %v1278 = vpop.xlane.xlu0 %1277
    %v1279 = vsel %vm66, %v1145, 0.0
    %1280 = vadd.xlane.f32.xlu0 %v1279
    %v1281 = vpop.xlane.xlu0 %1280
    %v1282 = vsel %vm66, %v1150, 0.0
    %1283 = vadd.xlane.f32.xlu0 %v1282
    %v1284 = vpop.xlane.xlu0 %1283
    %v1285 = vsel %vm66, %v1155, 0.0
    %1286 = vadd.xlane.f32.xlu0 %v1285
    %v1287 = vpop.xlane.xlu0 %1286
    %v1288 = vsel %vm66, %v1160, 0.0
    %1289 = vadd.xlane.f32.xlu0 %v1288
    %v1290 = vpop.xlane.xlu0 %1289
    %v1291 = vsel %vm66, %v1165, 0.0
    %1292 = vadd.xlane.f32.xlu0 %v1291
    %v1293 = vpop.xlane.xlu0 %1292
    %v1294 = vsel %vm66, %v1170, 0.0
    %1295 = vadd.xlane.f32.xlu0 %v1294
    %v1296 = vpop.xlane.xlu0 %1295
    %v1297 = vsel %vm66, %v1175, 0.0
    %1298 = vadd.xlane.f32.xlu0 %v1297
    %v1299 = vpop.xlane.xlu0 %1298
    %v1300 = vsel %vm66, %v1180, 0.0
    %1301 = vadd.xlane.f32.xlu0 %v1300
    %v1302 = vpop.xlane.xlu0 %1301
    %v1303 = vsel %vm66, %v1185, 0.0
    %1304 = vadd.xlane.f32.xlu0 %v1303
    %v1305 = vpop.xlane.xlu0 %1304
    %v1306 = vsel %vm66, %v1190, 0.0
    %1307 = vadd.xlane.f32.xlu0 %v1306
    %v1308 = vpop.xlane.xlu0 %1307
    %v1309 = vsel %vm66, %v1195, 0.0
    %1310 = vadd.xlane.f32.xlu0 %v1309
    %v1311 = vpop.xlane.xlu0 %1310
    %v1312 = vsel %vm66, %v1200, 0.0
    %1313 = vadd.xlane.f32.xlu0 %v1312
    %v1314 = vpop.xlane.xlu0 %1313
    %v1315 = vsel %vm66, %v1205, 0.0
    %1316 = vadd.xlane.f32.xlu0 %v1315
    %v1317 = vpop.xlane.xlu0 %1316
    %v1318 = vsel %vm66, %v1210, 0.0
    %1319 = vadd.xlane.f32.xlu0 %v1318
    %v1320 = vpop.xlane.xlu0 %1319
    %v1321 = vsel %vm66, %v1215, 0.0
    %1322 = vadd.xlane.f32.xlu0 %v1321
    %v1323 = vpop.xlane.xlu0 %1322
    %v1324 = vsel %vm66, %v1220, 0.0
    %1325 = vadd.xlane.f32.xlu0 %v1324
    %v1326 = vpop.xlane.xlu0 %1325
    %v1327 = vsel %vm66, %v1225, 0.0
    %1328 = vadd.xlane.f32.xlu0 %v1327
    %v1329 = vpop.xlane.xlu0 %1328
    %v1330 = vsel %vm66, %v1230, 0.0
    %1331 = vadd.xlane.f32.xlu0 %v1330
    %v1332 = vpop.xlane.xlu0 %1331
    %v1333 = vsel %vm66, %v1235, 0.0
    %1334 = vadd.xlane.f32.xlu0 %v1333
    %v1335 = vpop.xlane.xlu0 %1334
    %v1336 = vsel %vm66, %v1240, 0.0
    %1337 = vadd.xlane.f32.xlu0 %v1336
    %v1338 = vpop.xlane.xlu0 %1337
    %v1339 = vrcp.pop 32.0
    %v1340 = vmul.f32 %v1245, %v1339
    %v1341 = vmul.f32 %v1248, %v1339
    %v1342 = vmul.f32 %v1251, %v1339
    %v1343 = vmul.f32 %v1254, %v1339
    %v1344 = vmul.f32 %v1257, %v1339
    %v1345 = vmul.f32 %v1260, %v1339
    %v1346 = vmul.f32 %v1263, %v1339
    %v1347 = vmul.f32 %v1266, %v1339
    %v1348 = vmul.f32 %v1269, %v1339
    %v1349 = vmul.f32 %v1272, %v1339
    %v1350 = vmul.f32 %v1275, %v1339
    %v1351 = vmul.f32 %v1278, %v1339
    %v1352 = vmul.f32 %v1281, %v1339
    %v1353 = vmul.f32 %v1284, %v1339
    %v1354 = vmul.f32 %v1287, %v1339
    %v1355 = vmul.f32 %v1290, %v1339
    %v1356 = vmul.f32 %v1293, %v1339
    %v1357 = vmul.f32 %v1296, %v1339
    %v1358 = vmul.f32 %v1299, %v1339
    %v1359 = vmul.f32 %v1302, %v1339
    %v1360 = vmul.f32 %v1305, %v1339
    %v1361 = vmul.f32 %v1308, %v1339
    %v1362 = vmul.f32 %v1311, %v1339
    %v1363 = vmul.f32 %v1314, %v1339
    %v1364 = vmul.f32 %v1317, %v1339
    %v1365 = vmul.f32 %v1320, %v1339
    %v1366 = vmul.f32 %v1323, %v1339
    %v1367 = vmul.f32 %v1326, %v1339
    %v1368 = vmul.f32 %v1329, %v1339
    %v1369 = vmul.f32 %v1332, %v1339
    %v1370 = vmul.f32 %v1335, %v1339
    %v1371 = vmul.f32 %v1338, %v1339
    %v1372 = vsub.f32 %v1085, %v1340
    %v1373 = vsub.f32 %v1090, %v1341
    %v1374 = vsub.f32 %v1095, %v1342
    %v1375 = vsub.f32 %v1100, %v1343
    %v1376 = vsub.f32 %v1105, %v1344
    %v1377 = vsub.f32 %v1110, %v1345
    %v1378 = vsub.f32 %v1115, %v1346
    %v1379 = vsub.f32 %v1120, %v1347
    %v1380 = vsub.f32 %v1125, %v1348
    %v1381 = vsub.f32 %v1130, %v1349
    %v1382 = vsub.f32 %v1135, %v1350
    %v1383 = vsub.f32 %v1140, %v1351
    %v1384 = vsub.f32 %v1145, %v1352
    %v1385 = vsub.f32 %v1150, %v1353
    %v1386 = vsub.f32 %v1155, %v1354
    %v1387 = vsub.f32 %v1160, %v1355
    %v1388 = vsub.f32 %v1165, %v1356
    %v1389 = vsub.f32 %v1170, %v1357
    %v1390 = vsub.f32 %v1175, %v1358
    %v1391 = vsub.f32 %v1180, %v1359
    %v1392 = vsub.f32 %v1185, %v1360
    %v1393 = vsub.f32 %v1190, %v1361
    %v1394 = vsub.f32 %v1195, %v1362
    %v1395 = vsub.f32 %v1200, %v1363
    %v1396 = vsub.f32 %v1205, %v1364
    %v1397 = vsub.f32 %v1210, %v1365
    %v1398 = vsub.f32 %v1215, %v1366
    %v1399 = vsub.f32 %v1220, %v1367
    %v1400 = vsub.f32 %v1225, %v1368
    %v1401 = vsub.f32 %v1230, %v1369
    %v1402 = vsub.f32 %v1235, %v1370
    %v1403 = vsub.f32 %v1240, %v1371
    %v1404 = vmul.f32 %v1372, %v1372
    %v1405 = vmul.f32 %v1373, %v1373
    %v1406 = vmul.f32 %v1374, %v1374
    %v1407 = vmul.f32 %v1375, %v1375
    %v1408 = vmul.f32 %v1376, %v1376
    %v1409 = vmul.f32 %v1377, %v1377
    %v1410 = vmul.f32 %v1378, %v1378
    %v1411 = vmul.f32 %v1379, %v1379
    %v1412 = vmul.f32 %v1380, %v1380
    %v1413 = vmul.f32 %v1381, %v1381
    %v1414 = vmul.f32 %v1382, %v1382
    %v1415 = vmul.f32 %v1383, %v1383
    %v1416 = vmul.f32 %v1384, %v1384
    %v1417 = vmul.f32 %v1385, %v1385
    %v1418 = vmul.f32 %v1386, %v1386
    %v1419 = vmul.f32 %v1387, %v1387
    %v1420 = vmul.f32 %v1388, %v1388
    %v1421 = vmul.f32 %v1389, %v1389
    %v1422 = vmul.f32 %v1390, %v1390
    %v1423 = vmul.f32 %v1391, %v1391
    %v1424 = vmul.f32 %v1392, %v1392
    %v1425 = vmul.f32 %v1393, %v1393
    %v1426 = vmul.f32 %v1394, %v1394
    %v1427 = vmul.f32 %v1395, %v1395
    %v1428 = vmul.f32 %v1396, %v1396
    %v1429 = vmul.f32 %v1397, %v1397
    %v1430 = vmul.f32 %v1398, %v1398
    %v1431 = vmul.f32 %v1399, %v1399
    %v1432 = vmul.f32 %v1400, %v1400
    %v1433 = vmul.f32 %v1401, %v1401
    %v1434 = vmul.f32 %v1402, %v1402
    %v1435 = vmul.f32 %v1403, %v1403
    %v1436 = vsel %vm66, %v1404, 0.0
    %1437 = vadd.xlane.f32.xlu0 %v1436
    %v1438 = vpop.xlane.xlu0 %1437
    %v1439 = vsel %vm66, %v1405, 0.0
    %1440 = vadd.xlane.f32.xlu0 %v1439
    %v1441 = vpop.xlane.xlu0 %1440
    %v1442 = vsel %vm66, %v1406, 0.0
    %1443 = vadd.xlane.f32.xlu0 %v1442
    %v1444 = vpop.xlane.xlu0 %1443
    %v1445 = vsel %vm66, %v1407, 0.0
    %1446 = vadd.xlane.f32.xlu0 %v1445
    %v1447 = vpop.xlane.xlu0 %1446
    %v1448 = vsel %vm66, %v1408, 0.0
    %1449 = vadd.xlane.f32.xlu0 %v1448
    %v1450 = vpop.xlane.xlu0 %1449
    %v1451 = vsel %vm66, %v1409, 0.0
    %1452 = vadd.xlane.f32.xlu0 %v1451
    %v1453 = vpop.xlane.xlu0 %1452
    %v1454 = vsel %vm66, %v1410, 0.0
    %1455 = vadd.xlane.f32.xlu0 %v1454
    %v1456 = vpop.xlane.xlu0 %1455
    %v1457 = vsel %vm66, %v1411, 0.0
    %1458 = vadd.xlane.f32.xlu0 %v1457
    %v1459 = vpop.xlane.xlu0 %1458
    %v1460 = vsel %vm66, %v1412, 0.0
    %1461 = vadd.xlane.f32.xlu0 %v1460
    %v1462 = vpop.xlane.xlu0 %1461
    %v1463 = vsel %vm66, %v1413, 0.0
    %1464 = vadd.xlane.f32.xlu0 %v1463
    %v1465 = vpop.xlane.xlu0 %1464
    %v1466 = vsel %vm66, %v1414, 0.0
    %1467 = vadd.xlane.f32.xlu0 %v1466
    %v1468 = vpop.xlane.xlu0 %1467
    %v1469 = vsel %vm66, %v1415, 0.0
    %1470 = vadd.xlane.f32.xlu0 %v1469
    %v1471 = vpop.xlane.xlu0 %1470
    %v1472 = vsel %vm66, %v1416, 0.0
    %1473 = vadd.xlane.f32.xlu0 %v1472
    %v1474 = vpop.xlane.xlu0 %1473
    %v1475 = vsel %vm66, %v1417, 0.0
    %1476 = vadd.xlane.f32.xlu0 %v1475
    %v1477 = vpop.xlane.xlu0 %1476
    %v1478 = vsel %vm66, %v1418, 0.0
    %1479 = vadd.xlane.f32.xlu0 %v1478
    %v1480 = vpop.xlane.xlu0 %1479
    %v1481 = vsel %vm66, %v1419, 0.0
    %1482 = vadd.xlane.f32.xlu0 %v1481
    %v1483 = vpop.xlane.xlu0 %1482
    %v1484 = vsel %vm66, %v1420, 0.0
    %1485 = vadd.xlane.f32.xlu0 %v1484
    %v1486 = vpop.xlane.xlu0 %1485
    %v1487 = vsel %vm66, %v1421, 0.0
    %1488 = vadd.xlane.f32.xlu0 %v1487
    %v1489 = vpop.xlane.xlu0 %1488
    %v1490 = vsel %vm66, %v1422, 0.0
    %1491 = vadd.xlane.f32.xlu0 %v1490
    %v1492 = vpop.xlane.xlu0 %1491
    %v1493 = vsel %vm66, %v1423, 0.0
    %1494 = vadd.xlane.f32.xlu0 %v1493
    %v1495 = vpop.xlane.xlu0 %1494
    %v1496 = vsel %vm66, %v1424, 0.0
    %1497 = vadd.xlane.f32.xlu0 %v1496
    %v1498 = vpop.xlane.xlu0 %1497
    %v1499 = vsel %vm66, %v1425, 0.0
    %1500 = vadd.xlane.f32.xlu0 %v1499
    %v1501 = vpop.xlane.xlu0 %1500
    %v1502 = vsel %vm66, %v1426, 0.0
    %1503 = vadd.xlane.f32.xlu0 %v1502
    %v1504 = vpop.xlane.xlu0 %1503
    %v1505 = vsel %vm66, %v1427, 0.0
    %1506 = vadd.xlane.f32.xlu0 %v1505
    %v1507 = vpop.xlane.xlu0 %1506
    %v1508 = vsel %vm66, %v1428, 0.0
    %1509 = vadd.xlane.f32.xlu0 %v1508
    %v1510 = vpop.xlane.xlu0 %1509
    %v1511 = vsel %vm66, %v1429, 0.0
    %1512 = vadd.xlane.f32.xlu0 %v1511
    %v1513 = vpop.xlane.xlu0 %1512
    %v1514 = vsel %vm66, %v1430, 0.0
    %1515 = vadd.xlane.f32.xlu0 %v1514
    %v1516 = vpop.xlane.xlu0 %1515
    %v1517 = vsel %vm66, %v1431, 0.0
    %1518 = vadd.xlane.f32.xlu0 %v1517
    %v1519 = vpop.xlane.xlu0 %1518
    %v1520 = vsel %vm66, %v1432, 0.0
    %1521 = vadd.xlane.f32.xlu0 %v1520
    %v1522 = vpop.xlane.xlu0 %1521
    %v1523 = vsel %vm66, %v1433, 0.0
    %1524 = vadd.xlane.f32.xlu0 %v1523
    %v1525 = vpop.xlane.xlu0 %1524
    %v1526 = vsel %vm66, %v1434, 0.0
    %1527 = vadd.xlane.f32.xlu0 %v1526
    %v1528 = vpop.xlane.xlu0 %1527
    %v1529 = vsel %vm66, %v1435, 0.0
    %1530 = vadd.xlane.f32.xlu0 %v1529
    %v1531 = vpop.xlane.xlu0 %1530
    %v1532 = vmul.f32 %v1438, %v1339
    %v1533 = vmul.f32 %v1441, %v1339
    %v1534 = vmul.f32 %v1444, %v1339
    %v1535 = vmul.f32 %v1447, %v1339
    %v1536 = vmul.f32 %v1450, %v1339
    %v1537 = vmul.f32 %v1453, %v1339
    %v1538 = vmul.f32 %v1456, %v1339
    %v1539 = vmul.f32 %v1459, %v1339
    %v1540 = vmul.f32 %v1462, %v1339
    %v1541 = vmul.f32 %v1465, %v1339
    %v1542 = vmul.f32 %v1468, %v1339
    %v1543 = vmul.f32 %v1471, %v1339
    %v1544 = vmul.f32 %v1474, %v1339
    %v1545 = vmul.f32 %v1477, %v1339
    %v1546 = vmul.f32 %v1480, %v1339
    %v1547 = vmul.f32 %v1483, %v1339
    %v1548 = vmul.f32 %v1486, %v1339
    %v1549 = vmul.f32 %v1489, %v1339
    %v1550 = vmul.f32 %v1492, %v1339
    %v1551 = vmul.f32 %v1495, %v1339
    %v1552 = vmul.f32 %v1498, %v1339
    %v1553 = vmul.f32 %v1501, %v1339
    %v1554 = vmul.f32 %v1504, %v1339
    %v1555 = vmul.f32 %v1507, %v1339
    %v1556 = vmul.f32 %v1510, %v1339
    %v1557 = vmul.f32 %v1513, %v1339
    %v1558 = vmul.f32 %v1516, %v1339
    %v1559 = vmul.f32 %v1519, %v1339
    %v1560 = vmul.f32 %v1522, %v1339
    %v1561 = vmul.f32 %v1525, %v1339
    %v1562 = vmul.f32 %v1528, %v1339
    %v1563 = vmul.f32 %v1531, %v1339
    %v1564 = vadd.f32 %v1532, 1e-05
    %v1565 = vadd.f32 %v1533, 1e-05
    %v1566 = vadd.f32 %v1534, 1e-05
    %v1567 = vadd.f32 %v1535, 1e-05
    %v1568 = vadd.f32 %v1536, 1e-05
    %v1569 = vadd.f32 %v1537, 1e-05
    %v1570 = vadd.f32 %v1538, 1e-05
    %v1571 = vadd.f32 %v1539, 1e-05
    %v1572 = vadd.f32 %v1540, 1e-05
    %v1573 = vadd.f32 %v1541, 1e-05
    %v1574 = vadd.f32 %v1542, 1e-05
    %v1575 = vadd.f32 %v1543, 1e-05
    %v1576 = vadd.f32 %v1544, 1e-05
    %v1577 = vadd.f32 %v1545, 1e-05
    %v1578 = vadd.f32 %v1546, 1e-05
    %v1579 = vadd.f32 %v1547, 1e-05
    %v1580 = vadd.f32 %v1548, 1e-05
    %v1581 = vadd.f32 %v1549, 1e-05
    %v1582 = vadd.f32 %v1550, 1e-05
    %v1583 = vadd.f32 %v1551, 1e-05
    %v1584 = vadd.f32 %v1552, 1e-05
    %v1585 = vadd.f32 %v1553, 1e-05
    %v1586 = vadd.f32 %v1554, 1e-05
    %v1587 = vadd.f32 %v1555, 1e-05
    %v1588 = vadd.f32 %v1556, 1e-05
    %v1589 = vadd.f32 %v1557, 1e-05
    %v1590 = vadd.f32 %v1558, 1e-05
    %v1591 = vadd.f32 %v1559, 1e-05
    %v1592 = vadd.f32 %v1560, 1e-05
    %v1593 = vadd.f32 %v1561, 1e-05
    %v1594 = vadd.f32 %v1562, 1e-05
    %v1595 = vadd.f32 %v1563, 1e-05
    %v1596 = vrsqrt.pop %v1564
    %v1597 = vrsqrt.pop %v1565
    %v1598 = vrsqrt.pop %v1566
    %v1599 = vrsqrt.pop %v1567
    %v1600 = vrsqrt.pop %v1568
    %v1601 = vrsqrt.pop %v1569
    %v1602 = vrsqrt.pop %v1570
    %v1603 = vrsqrt.pop %v1571
    %v1604 = vrsqrt.pop %v1572
    %v1605 = vrsqrt.pop %v1573
    %v1606 = vrsqrt.pop %v1574
    %v1607 = vrsqrt.pop %v1575
    %v1608 = vrsqrt.pop %v1576
    %v1609 = vrsqrt.pop %v1577
    %v1610 = vrsqrt.pop %v1578
    %v1611 = vrsqrt.pop %v1579
    %v1612 = vrsqrt.pop %v1580
    %v1613 = vrsqrt.pop %v1581
    %v1614 = vrsqrt.pop %v1582
    %v1615 = vrsqrt.pop %v1583
    %v1616 = vrsqrt.pop %v1584
    %v1617 = vrsqrt.pop %v1585
    %v1618 = vrsqrt.pop %v1586
    %v1619 = vrsqrt.pop %v1587
    %v1620 = vrsqrt.pop %v1588
    %v1621 = vrsqrt.pop %v1589
    %v1622 = vrsqrt.pop %v1590
    %v1623 = vrsqrt.pop %v1591
    %v1624 = vrsqrt.pop %v1592
    %v1625 = vrsqrt.pop %v1593
    %v1626 = vrsqrt.pop %v1594
    %v1627 = vrsqrt.pop %v1595
    %v1628 = vmul.f32 %v1372, %v1596
    %v1629 = vmul.f32 %v1373, %v1597
    %v1630 = vmul.f32 %v1374, %v1598
    %v1631 = vmul.f32 %v1375, %v1599
    %v1632 = vmul.f32 %v1376, %v1600
    %v1633 = vmul.f32 %v1377, %v1601
    %v1634 = vmul.f32 %v1378, %v1602
    %v1635 = vmul.f32 %v1379, %v1603
    %v1636 = vmul.f32 %v1380, %v1604
    %v1637 = vmul.f32 %v1381, %v1605
    %v1638 = vmul.f32 %v1382, %v1606
    %v1639 = vmul.f32 %v1383, %v1607
    %v1640 = vmul.f32 %v1384, %v1608
    %v1641 = vmul.f32 %v1385, %v1609
    %v1642 = vmul.f32 %v1386, %v1610
    %v1643 = vmul.f32 %v1387, %v1611
    %v1644 = vmul.f32 %v1388, %v1612
    %v1645 = vmul.f32 %v1389, %v1613
    %v1646 = vmul.f32 %v1390, %v1614
    %v1647 = vmul.f32 %v1391, %v1615
    %v1648 = vmul.f32 %v1392, %v1616
    %v1649 = vmul.f32 %v1393, %v1617
    %v1650 = vmul.f32 %v1394, %v1618
    %v1651 = vmul.f32 %v1395, %v1619
    %v1652 = vmul.f32 %v1396, %v1620
    %v1653 = vmul.f32 %v1397, %v1621
    %v1654 = vmul.f32 %v1398, %v1622
    %v1655 = vmul.f32 %v1399, %v1623
    %v1656 = vmul.f32 %v1400, %v1624
    %v1657 = vmul.f32 %v1401, %v1625
    %v1658 = vmul.f32 %v1402, %v1626
    %v1659 = vmul.f32 %v1403, %v1627
    %v1660 = vlaneseq
    %v1661 = vshrl.u32 %v1660, 7
    %v1662 = vsub.s32 4, %v1661
    %v1663 = vrot.slane %v24, %v1662
    %v1664 = vmul.f32 %v1628, %v1663
    %v1665 = vmul.f32 %v1629, %v1663
    %v1666 = vmul.f32 %v1630, %v1663
    %v1667 = vmul.f32 %v1631, %v1663
    %v1668 = vmul.f32 %v1632, %v1663
    %v1669 = vmul.f32 %v1633, %v1663
    %v1670 = vmul.f32 %v1634, %v1663
    %v1671 = vmul.f32 %v1635, %v1663
    %v1672 = vmul.f32 %v1636, %v1663
    %v1673 = vmul.f32 %v1637, %v1663
    %v1674 = vmul.f32 %v1638, %v1663
    %v1675 = vmul.f32 %v1639, %v1663
    %v1676 = vmul.f32 %v1640, %v1663
    %v1677 = vmul.f32 %v1641, %v1663
    %v1678 = vmul.f32 %v1642, %v1663
    %v1679 = vmul.f32 %v1643, %v1663
    %v1680 = vmul.f32 %v1644, %v1663
    %v1681 = vmul.f32 %v1645, %v1663
    %v1682 = vmul.f32 %v1646, %v1663
    %v1683 = vmul.f32 %v1647, %v1663
    %v1684 = vmul.f32 %v1648, %v1663
    %v1685 = vmul.f32 %v1649, %v1663
    %v1686 = vmul.f32 %v1650, %v1663
    %v1687 = vmul.f32 %v1651, %v1663
    %v1688 = vmul.f32 %v1652, %v1663
    %v1689 = vmul.f32 %v1653, %v1663
    %v1690 = vmul.f32 %v1654, %v1663
    %v1691 = vmul.f32 %v1655, %v1663
    %v1692 = vmul.f32 %v1656, %v1663
    %v1693 = vmul.f32 %v1657, %v1663
    %v1694 = vmul.f32 %v1658, %v1663
    %v1695 = vmul.f32 %v1659, %v1663
    %v1696 = vlaneseq
    %v1697 = vshrl.u32 %v1696, 7
    %v1698 = vsub.s32 5, %v1697
    %v1699 = vrot.slane %v24, %v1698
    %v1700 = vadd.f32 %v1664, %v1699
    %v1701 = vadd.f32 %v1665, %v1699
    %v1702 = vadd.f32 %v1666, %v1699
    %v1703 = vadd.f32 %v1667, %v1699
    %v1704 = vadd.f32 %v1668, %v1699
    %v1705 = vadd.f32 %v1669, %v1699
    %v1706 = vadd.f32 %v1670, %v1699
    %v1707 = vadd.f32 %v1671, %v1699
    %v1708 = vadd.f32 %v1672, %v1699
    %v1709 = vadd.f32 %v1673, %v1699
    %v1710 = vadd.f32 %v1674, %v1699
    %v1711 = vadd.f32 %v1675, %v1699
    %v1712 = vadd.f32 %v1676, %v1699
    %v1713 = vadd.f32 %v1677, %v1699
    %v1714 = vadd.f32 %v1678, %v1699
    %v1715 = vadd.f32 %v1679, %v1699
    %v1716 = vadd.f32 %v1680, %v1699
    %v1717 = vadd.f32 %v1681, %v1699
    %v1718 = vadd.f32 %v1682, %v1699
    %v1719 = vadd.f32 %v1683, %v1699
    %v1720 = vadd.f32 %v1684, %v1699
    %v1721 = vadd.f32 %v1685, %v1699
    %v1722 = vadd.f32 %v1686, %v1699
    %v1723 = vadd.f32 %v1687, %v1699
    %v1724 = vadd.f32 %v1688, %v1699
    %v1725 = vadd.f32 %v1689, %v1699
    %v1726 = vadd.f32 %v1690, %v1699
    %v1727 = vadd.f32 %v1691, %v1699
    %v1728 = vadd.f32 %v1692, %v1699
    %v1729 = vadd.f32 %v1693, %v1699
    %v1730 = vadd.f32 %v1694, %v1699
    %v1731 = vadd.f32 %v1695, %v1699
    %v1732 = vld [vmem:[%s1] sm:$0xff]
    %v1733 = vld [vmem:[%s1 + $0x8] sm:$0xff]
    %v1734 = vld [vmem:[%s1 + $0x10] sm:$0xff]
    %v1735 = vld [vmem:[%s1 + $0x18] sm:$0xff]
    %v1736 = vld [vmem:[%s1 + $0x20] sm:$0xff]
    %v1737 = vld [vmem:[%s1 + $0x28] sm:$0xff]
    %v1738 = vld [vmem:[%s1 + $0x30] sm:$0xff]
    %v1739 = vld [vmem:[%s1 + $0x38] sm:$0xff]
    %v1740 = vld [vmem:[%s1 + $0x40] sm:$0xff]
    %v1741 = vld [vmem:[%s1 + $0x48] sm:$0xff]
    %v1742 = vld [vmem:[%s1 + $0x50] sm:$0xff]
    %v1743 = vld [vmem:[%s1 + $0x58] sm:$0xff]
    %v1744 = vld [vmem:[%s1 + $0x60] sm:$0xff]
    %v1745 = vld [vmem:[%s1 + $0x68] sm:$0xff]
    %v1746 = vld [vmem:[%s1 + $0x70] sm:$0xff]
    %v1747 = vld [vmem:[%s1 + $0x78] sm:$0xff]
    %v1748 = vld [vmem:[%s1 + $0x80] sm:$0xff]
    %v1749 = vld [vmem:[%s1 + $0x88] sm:$0xff]
    %v1750 = vld [vmem:[%s1 + $0x90] sm:$0xff]
    %v1751 = vld [vmem:[%s1 + $0x98] sm:$0xff]
    %v1752 = vld [vmem:[%s1 + $0xa0] sm:$0xff]
    %v1753 = vld [vmem:[%s1 + $0xa8] sm:$0xff]
    %v1754 = vld [vmem:[%s1 + $0xb0] sm:$0xff]
    %v1755 = vld [vmem:[%s1 + $0xb8] sm:$0xff]
    %v1756 = vld [vmem:[%s1 + $0xc0] sm:$0xff]
    %v1757 = vld [vmem:[%s1 + $0xc8] sm:$0xff]
    %v1758 = vld [vmem:[%s1 + $0xd0] sm:$0xff]
    %v1759 = vld [vmem:[%s1 + $0xd8] sm:$0xff]
    %v1760 = vld [vmem:[%s1 + $0xe0] sm:$0xff]
    %v1761 = vld [vmem:[%s1 + $0xe8] sm:$0xff]
    %v1762 = vld [vmem:[%s1 + $0xf0] sm:$0xff]
    %v1763 = vld [vmem:[%s1 + $0xf8] sm:$0xff]
    %v1764 = vld [vmem:[%s3] sm:$0xff]
    %v1765 = vlaneseq
    %v1766 = vshrl.u32 %v1765, 7
    %v1767 = vsub.s32 6, %v1766
    %v1768 = vrot.slane %v24, %v1767
    %vm1769 = vcmask 64512
    %v1771 = vsel %vm1769, %v1732, 0
    %v1774 = vsel %vm1769, %v1733, 0
    %v1777 = vsel %vm1769, %v1734, 0
    %v1780 = vsel %vm1769, %v1735, 0
    %v1783 = vsel %vm1769, %v1736, 0
    %v1786 = vsel %vm1769, %v1737, 0
    %v1789 = vsel %vm1769, %v1738, 0
    %v1792 = vsel %vm1769, %v1739, 0
    %v1795 = vsel %vm1769, %v1740, 0
    %v1798 = vsel %vm1769, %v1741, 0
    %v1801 = vsel %vm1769, %v1742, 0
    %v1804 = vsel %vm1769, %v1743, 0
    %v1807 = vsel %vm1769, %v1744, 0
    %v1810 = vsel %vm1769, %v1745, 0
    %v1813 = vsel %vm1769, %v1746, 0
    %v1816 = vsel %vm1769, %v1747, 0
    %v1819 = vsel %vm1769, %v1748, 0
    %v1822 = vsel %vm1769, %v1749, 0
    %v1825 = vsel %vm1769, %v1750, 0
    %v1828 = vsel %vm1769, %v1751, 0
    %v1831 = vsel %vm1769, %v1752, 0
    %v1834 = vsel %vm1769, %v1753, 0
    %v1837 = vsel %vm1769, %v1754, 0
    %v1840 = vsel %vm1769, %v1755, 0
    %v1843 = vsel %vm1769, %v1756, 0
    %v1846 = vsel %vm1769, %v1757, 0
    %v1849 = vsel %vm1769, %v1758, 0
    %v1852 = vsel %vm1769, %v1759, 0
    %v1855 = vsel %vm1769, %v1760, 0
    %v1858 = vsel %vm1769, %v1761, 0
    %v1861 = vsel %vm1769, %v1762, 0
    %v1864 = vsel %vm1769, %v1763, 0
    %1866 = vmatprep.subr.mxu0 0.0
    %1867 = vmatpush1.msra.mxu0 %v1764
    %1868 = vmatprep.subr.mxu0 0.0
    %1869 = vmatpush1.msra.mxu0 0.0
    %1870 = vmatprep.subr.mxu0 0.0
    %1871 = vmatpush1.msra.mxu0 0.0
    %1872 = vmatprep.subr.mxu0 0.0
    %1873 = vmatpush1.msra.mxu0 0.0
    %1874 = vmatprep.subr.mxu0 0.0
    %1875 = vmatpush1.msra.mxu0 0.0
    %1876 = vmatprep.subr.mxu0 0.0
    %1877 = vmatpush1.msra.mxu0 0.0
    %1878 = vmatprep.subr.mxu0 0.0
    %1879 = vmatpush1.msra.mxu0 0.0
    %1880 = vmatprep.subr.mxu0 0.0
    %1881 = vmatpush1.msra.mxu0 0.0
    %1882 = vmatprep.subr.mxu0 0.0
    %1883 = vmatpush1.msra.mxu0 0.0
    %1884 = vmatprep.subr.mxu0 0.0
    %1885 = vmatpush1.msra.mxu0 0.0
    %1886 = vmatprep.subr.mxu0 0.0
    %1887 = vmatpush1.msra.mxu0 0.0
    %1888 = vmatprep.subr.mxu0 0.0
    %1889 = vmatpush1.msra.mxu0 0.0
    %1890 = vmatprep.subr.mxu0 0.0
    %1891 = vmatpush1.msra.mxu0 0.0
    %1892 = vmatprep.subr.mxu0 0.0
    %1893 = vmatpush1.msra.mxu0 0.0
    %1894 = vmatprep.subr.mxu0 0.0
    %1895 = vmatpush1.msra.mxu0 0.0
    %1896 = vmatprep.subr.mxu0 0.0
    %1897 = vmatpush1.msra.mxu0 0.0
    %1898 = vmatprep.subr.mxu0 0.0
    %1899 = vmatpush1.msra.mxu0 0.0
    %1900 = vmatprep.subr.mxu0 0.0
    %1901 = vmatpush1.msra.mxu0 0.0
    %1902 = vmatprep.subr.mxu0 0.0
    %1903 = vmatpush1.msra.mxu0 0.0
    %1904 = vmatprep.subr.mxu0 0.0
    %1905 = vmatpush1.msra.mxu0 0.0
    %1906 = vmatprep.subr.mxu0 0.0
    %1907 = vmatpush1.msra.mxu0 0.0
    %1908 = vmatprep.subr.mxu0 0.0
    %1909 = vmatpush1.msra.mxu0 0.0
    %1910 = vmatprep.subr.mxu0 0.0
    %1911 = vmatpush1.msra.mxu0 0.0
    %1912 = vmatprep.subr.mxu0 0.0
    %1913 = vmatpush1.msra.mxu0 0.0
    %1914 = vmatprep.subr.mxu0 0.0
    %1915 = vmatpush1.msra.mxu0 0.0
    %1916 = vmatprep.subr.mxu0 0.0
    %1917 = vmatpush1.msra.mxu0 0.0
    %1918 = vmatprep.subr.mxu0 0.0
    %1919 = vmatpush1.msra.mxu0 0.0
    %1920 = vmatprep.subr.mxu0 0.0
    %1921 = vmatpush1.msra.mxu0 0.0
    %1922 = vmatprep.subr.mxu0 0.0
    %1923 = vmatpush1.msra.mxu0 0.0
    %1924 = vmatprep.subr.mxu0 0.0
    %1925 = vmatpush1.msra.mxu0 0.0
    %1926 = vmatprep.subr.mxu0 0.0
    %1927 = vmatpush1.msra.mxu0 0.0
    %1928 = vmatprep.subr.mxu0 0.0
    %1929 = vmatpush1.msra.mxu0 0.0
    %1930 = vmatprep.mubr.f32.mxu0 0.0
    %1931 = vmatmul.mubr.f32.gmra.mrb[0].mxu0 %v1771
    %v1932 = vpop.f32.mrb[0].mxu0
    %v1933 = vadd.f32 %v1768, %v1932
    %v1934 = vpop.f32.mrb[0].mxu0
    %1935 = vmatprep.mubr.f32.mxu0 0.0
    %1936 = vmatmul.mubr.f32.gmra.mrb[0].mxu0 %v1774
    %v1937 = vpop.f32.mrb[0].mxu0
    %v1938 = vadd.f32 %v1768, %v1937
    %v1939 = vpop.f32.mrb[0].mxu0
    %1940 = vmatprep.mubr.f32.mxu0 0.0
    %1941 = vmatmul.mubr.f32.gmra.mrb[0].mxu0 %v1777
    %v1942 = vpop.f32.mrb[0].mxu0
    %v1943 = vadd.f32 %v1768, %v1942
    %v1944 = vpop.f32.mrb[0].mxu0
    %1945 = vmatprep.mubr.f32.mxu0 0.0
    %1946 = vmatmul.mubr.f32.gmra.mrb[0].mxu0 %v1780
    %v1947 = vpop.f32.mrb[0].mxu0
    %v1948 = vadd.f32 %v1768, %v1947
    %v1949 = vpop.f32.mrb[0].mxu0
    %1950 = vmatprep.mubr.f32.mxu0 0.0
    %1951 = vmatmul.mubr.f32.gmra.mrb[0].mxu0 %v1783
    %v1952 = vpop.f32.mrb[0].mxu0
    %v1953 = vadd.f32 %v1768, %v1952
    %v1954 = vpop.f32.mrb[0].mxu0
    %1955 = vmatprep.mubr.f32.mxu0 0.0
    %1956 = vmatmul.mubr.f32.gmra.mrb[0].mxu0 %v1786
    %v1957 = vpop.f32.mrb[0].mxu0
    %v1958 = vadd.f32 %v1768, %v1957
    %v1959 = vpop.f32.mrb[0].mxu0
    %1960 = vmatprep.mubr.f32.mxu0 0.0
    %1961 = vmatmul.mubr.f32.gmra.mrb[0].mxu0 %v1789
    %v1962 = vpop.f32.mrb[0].mxu0
    %v1963 = vadd.f32 %v1768, %v1962
    %v1964 = vpop.f32.mrb[0].mxu0
    %1965 = vmatprep.mubr.f32.mxu0 0.0
    %1966 = vmatmul.mubr.f32.gmra.mrb[0].mxu0 %v1792
    %v1967 = vpop.f32.mrb[0].mxu0
    %v1968 = vadd.f32 %v1768, %v1967
    %v1969 = vpop.f32.mrb[0].mxu0
    %1970 = vmatprep.mubr.f32.mxu0 0.0
    %1971 = vmatmul.mubr.f32.gmra.mrb[0].mxu0 %v1795
    %v1972 = vpop.f32.mrb[0].mxu0
    %v1973 = vadd.f32 %v1768, %v1972
    %v1974 = vpop.f32.mrb[0].mxu0
    %1975 = vmatprep.mubr.f32.mxu0 0.0
    %1976 = vmatmul.mubr.f32.gmra.mrb[0].mxu0 %v1798
    %v1977 = vpop.f32.mrb[0].mxu0
    %v1978 = vadd.f32 %v1768, %v1977
    %v1979 = vpop.f32.mrb[0].mxu0
    %1980 = vmatprep.mubr.f32.mxu0 0.0
    %1981 = vmatmul.mubr.f32.gmra.mrb[0].mxu0 %v1801
    %v1982 = vpop.f32.mrb[0].mxu0
    %v1983 = vadd.f32 %v1768, %v1982
    %v1984 = vpop.f32.mrb[0].mxu0
    %1985 = vmatprep.mubr.f32.mxu0 0.0
    %1986 = vmatmul.mubr.f32.gmra.mrb[0].mxu0 %v1804
    %v1987 = vpop.f32.mrb[0].mxu0
    %v1988 = vadd.f32 %v1768, %v1987
    %v1989 = vpop.f32.mrb[0].mxu0
    %1990 = vmatprep.mubr.f32.mxu0 0.0
    %1991 = vmatmul.mubr.f32.gmra.mrb[0].mxu0 %v1807
    %v1992 = vpop.f32.mrb[0].mxu0
    %v1993 = vadd.f32 %v1768, %v1992
    %v1994 = vpop.f32.mrb[0].mxu0
    %1995 = vmatprep.mubr.f32.mxu0 0.0
    %1996 = vmatmul.mubr.f32.gmra.mrb[0].mxu0 %v1810
    %v1997 = vpop.f32.mrb[0].mxu0
    %v1998 = vadd.f32 %v1768, %v1997
    %v1999 = vpop.f32.mrb[0].mxu0
    %2000 = vmatprep.mubr.f32.mxu0 0.0
    %2001 = vmatmul.mubr.f32.gmra.mrb[0].mxu0 %v1813
    %v2002 = vpop.f32.mrb[0].mxu0
    %v2003 = vadd.f32 %v1768, %v2002
    %v2004 = vpop.f32.mrb[0].mxu0
    %2005 = vmatprep.mubr.f32.mxu0 0.0
    %2006 = vmatmul.mubr.f32.gmra.mrb[0].mxu0 %v1816
    %v2007 = vpop.f32.mrb[0].mxu0
    %v2008 = vadd.f32 %v1768, %v2007
    %v2009 = vpop.f32.mrb[0].mxu0
    %2010 = vmatprep.mubr.f32.mxu0 0.0
    %2011 = vmatmul.mubr.f32.gmra.mrb[0].mxu0 %v1819
    %v2012 = vpop.f32.mrb[0].mxu0
    %v2013 = vadd.f32 %v1768, %v2012
    %v2014 = vpop.f32.mrb[0].mxu0
    %2015 = vmatprep.mubr.f32.mxu0 0.0
    %2016 = vmatmul.mubr.f32.gmra.mrb[0].mxu0 %v1822
    %v2017 = vpop.f32.mrb[0].mxu0
    %v2018 = vadd.f32 %v1768, %v2017
    %v2019 = vpop.f32.mrb[0].mxu0
    %2020 = vmatprep.mubr.f32.mxu0 0.0
    %2021 = vmatmul.mubr.f32.gmra.mrb[0].mxu0 %v1825
    %v2022 = vpop.f32.mrb[0].mxu0
    %v2023 = vadd.f32 %v1768, %v2022
    %v2024 = vpop.f32.mrb[0].mxu0
    %2025 = vmatprep.mubr.f32.mxu0 0.0
    %2026 = vmatmul.mubr.f32.gmra.mrb[0].mxu0 %v1828
    %v2027 = vpop.f32.mrb[0].mxu0
    %v2028 = vadd.f32 %v1768, %v2027
    %v2029 = vpop.f32.mrb[0].mxu0
    %2030 = vmatprep.mubr.f32.mxu0 0.0
    %2031 = vmatmul.mubr.f32.gmra.mrb[0].mxu0 %v1831
    %v2032 = vpop.f32.mrb[0].mxu0
    %v2033 = vadd.f32 %v1768, %v2032
    %v2034 = vpop.f32.mrb[0].mxu0
    %2035 = vmatprep.mubr.f32.mxu0 0.0
    %2036 = vmatmul.mubr.f32.gmra.mrb[0].mxu0 %v1834
    %v2037 = vpop.f32.mrb[0].mxu0
    %v2038 = vadd.f32 %v1768, %v2037
    %v2039 = vpop.f32.mrb[0].mxu0
    %2040 = vmatprep.mubr.f32.mxu0 0.0
    %2041 = vmatmul.mubr.f32.gmra.mrb[0].mxu0 %v1837
    %v2042 = vpop.f32.mrb[0].mxu0
    %v2043 = vadd.f32 %v1768, %v2042
    %v2044 = vpop.f32.mrb[0].mxu0
    %2045 = vmatprep.mubr.f32.mxu0 0.0
    %2046 = vmatmul.mubr.f32.gmra.mrb[0].mxu0 %v1840
    %v2047 = vpop.f32.mrb[0].mxu0
    %v2048 = vadd.f32 %v1768, %v2047
    %v2049 = vpop.f32.mrb[0].mxu0
    %2050 = vmatprep.mubr.f32.mxu0 0.0
    %2051 = vmatmul.mubr.f32.gmra.mrb[0].mxu0 %v1843
    %v2052 = vpop.f32.mrb[0].mxu0
    %v2053 = vadd.f32 %v1768, %v2052
    %v2054 = vpop.f32.mrb[0].mxu0
    %2055 = vmatprep.mubr.f32.mxu0 0.0
    %2056 = vmatmul.mubr.f32.gmra.mrb[0].mxu0 %v1846
    %v2057 = vpop.f32.mrb[0].mxu0
    %v2058 = vadd.f32 %v1768, %v2057
    %v2059 = vpop.f32.mrb[0].mxu0
    %2060 = vmatprep.mubr.f32.mxu0 0.0
    %2061 = vmatmul.mubr.f32.gmra.mrb[0].mxu0 %v1849
    %v2062 = vpop.f32.mrb[0].mxu0
    %v2063 = vadd.f32 %v1768, %v2062
    %v2064 = vpop.f32.mrb[0].mxu0
    %2065 = vmatprep.mubr.f32.mxu0 0.0
    %2066 = vmatmul.mubr.f32.gmra.mrb[0].mxu0 %v1852
    %v2067 = vpop.f32.mrb[0].mxu0
    %v2068 = vadd.f32 %v1768, %v2067
    %v2069 = vpop.f32.mrb[0].mxu0
    %2070 = vmatprep.mubr.f32.mxu0 0.0
    %2071 = vmatmul.mubr.f32.gmra.mrb[0].mxu0 %v1855
    %v2072 = vpop.f32.mrb[0].mxu0
    %v2073 = vadd.f32 %v1768, %v2072
    %v2074 = vpop.f32.mrb[0].mxu0
    %2075 = vmatprep.mubr.f32.mxu0 0.0
    %2076 = vmatmul.mubr.f32.gmra.mrb[0].mxu0 %v1858
    %v2077 = vpop.f32.mrb[0].mxu0
    %v2078 = vadd.f32 %v1768, %v2077
    %v2079 = vpop.f32.mrb[0].mxu0
    %2080 = vmatprep.mubr.f32.mxu0 0.0
    %2081 = vmatmul.mubr.f32.gmra.mrb[0].mxu0 %v1861
    %v2082 = vpop.f32.mrb[0].mxu0
    %v2083 = vadd.f32 %v1768, %v2082
    %v2084 = vpop.f32.mrb[0].mxu0
    %2085 = vmatprep.mubr.f32.mxu0 0.0
    %2086 = vmatmul.mubr.f32.gmra.mrb[0].mxu0 %v1864
    %v2087 = vpop.f32.mrb[0].mxu0
    %v2088 = vadd.f32 %v1768, %v2087
    %v2089 = vpop.f32.mrb[0].mxu0
    %2090 = vdwg.mxu0
    %v2091 = vmax.f32 %v1933, 0.0
    %v2092 = vmax.f32 %v1938, 0.0
    %v2093 = vmax.f32 %v1943, 0.0
    %v2094 = vmax.f32 %v1948, 0.0
    %v2095 = vmax.f32 %v1953, 0.0
    %v2096 = vmax.f32 %v1958, 0.0
    %v2097 = vmax.f32 %v1963, 0.0
    %v2098 = vmax.f32 %v1968, 0.0
    %v2099 = vmax.f32 %v1973, 0.0
    %v2100 = vmax.f32 %v1978, 0.0
    %v2101 = vmax.f32 %v1983, 0.0
    %v2102 = vmax.f32 %v1988, 0.0
    %v2103 = vmax.f32 %v1993, 0.0
    %v2104 = vmax.f32 %v1998, 0.0
    %v2105 = vmax.f32 %v2003, 0.0
    %v2106 = vmax.f32 %v2008, 0.0
    %v2107 = vmax.f32 %v2013, 0.0
    %v2108 = vmax.f32 %v2018, 0.0
    %v2109 = vmax.f32 %v2023, 0.0
    %v2110 = vmax.f32 %v2028, 0.0
    %v2111 = vmax.f32 %v2033, 0.0
    %v2112 = vmax.f32 %v2038, 0.0
    %v2113 = vmax.f32 %v2043, 0.0
    %v2114 = vmax.f32 %v2048, 0.0
    %v2115 = vmax.f32 %v2053, 0.0
    %v2116 = vmax.f32 %v2058, 0.0
    %v2117 = vmax.f32 %v2063, 0.0
    %v2118 = vmax.f32 %v2068, 0.0
    %v2119 = vmax.f32 %v2073, 0.0
    %v2120 = vmax.f32 %v2078, 0.0
    %v2121 = vmax.f32 %v2083, 0.0
    %v2122 = vmax.f32 %v2088, 0.0
    %v2123 = vadd.f32 %v1700, %v2091
    %v2124 = vadd.f32 %v1701, %v2092
    %v2125 = vadd.f32 %v1702, %v2093
    %v2126 = vadd.f32 %v1703, %v2094
    %v2127 = vadd.f32 %v1704, %v2095
    %v2128 = vadd.f32 %v1705, %v2096
    %v2129 = vadd.f32 %v1706, %v2097
    %v2130 = vadd.f32 %v1707, %v2098
    %v2131 = vadd.f32 %v1708, %v2099
    %v2132 = vadd.f32 %v1709, %v2100
    %v2133 = vadd.f32 %v1710, %v2101
    %v2134 = vadd.f32 %v1711, %v2102
    %v2135 = vadd.f32 %v1712, %v2103
    %v2136 = vadd.f32 %v1713, %v2104
    %v2137 = vadd.f32 %v1714, %v2105
    %v2138 = vadd.f32 %v1715, %v2106
    %v2139 = vadd.f32 %v1716, %v2107
    %v2140 = vadd.f32 %v1717, %v2108
    %v2141 = vadd.f32 %v1718, %v2109
    %v2142 = vadd.f32 %v1719, %v2110
    %v2143 = vadd.f32 %v1720, %v2111
    %v2144 = vadd.f32 %v1721, %v2112
    %v2145 = vadd.f32 %v1722, %v2113
    %v2146 = vadd.f32 %v1723, %v2114
    %v2147 = vadd.f32 %v1724, %v2115
    %v2148 = vadd.f32 %v1725, %v2116
    %v2149 = vadd.f32 %v1726, %v2117
    %v2150 = vadd.f32 %v1727, %v2118
    %v2151 = vadd.f32 %v1728, %v2119
    %v2152 = vadd.f32 %v1729, %v2120
    %v2153 = vadd.f32 %v1730, %v2121
    %v2154 = vadd.f32 %v1731, %v2122
    %v2155 = vmax.f32 %v2123, 0.0
    %v2156 = vmax.f32 %v2124, 0.0
    %v2157 = vmax.f32 %v2125, 0.0
    %v2158 = vmax.f32 %v2126, 0.0
    %v2159 = vmax.f32 %v2127, 0.0
    %v2160 = vmax.f32 %v2128, 0.0
    %v2161 = vmax.f32 %v2129, 0.0
    %v2162 = vmax.f32 %v2130, 0.0
    %v2163 = vmax.f32 %v2131, 0.0
    %v2164 = vmax.f32 %v2132, 0.0
    %v2165 = vmax.f32 %v2133, 0.0
    %v2166 = vmax.f32 %v2134, 0.0
    %v2167 = vmax.f32 %v2135, 0.0
    %v2168 = vmax.f32 %v2136, 0.0
    %v2169 = vmax.f32 %v2137, 0.0
    %v2170 = vmax.f32 %v2138, 0.0
    %v2171 = vmax.f32 %v2139, 0.0
    %v2172 = vmax.f32 %v2140, 0.0
    %v2173 = vmax.f32 %v2141, 0.0
    %v2174 = vmax.f32 %v2142, 0.0
    %v2175 = vmax.f32 %v2143, 0.0
    %v2176 = vmax.f32 %v2144, 0.0
    %v2177 = vmax.f32 %v2145, 0.0
    %v2178 = vmax.f32 %v2146, 0.0
    %v2179 = vmax.f32 %v2147, 0.0
    %v2180 = vmax.f32 %v2148, 0.0
    %v2181 = vmax.f32 %v2149, 0.0
    %v2182 = vmax.f32 %v2150, 0.0
    %v2183 = vmax.f32 %v2151, 0.0
    %v2184 = vmax.f32 %v2152, 0.0
    %v2185 = vmax.f32 %v2153, 0.0
    %v2186 = vmax.f32 %v2154, 0.0
    %2188 = vset.pattern.permute.xlu0 0
    %2189 = vperm.xlu0 %2188, %v25
    %v2190 = vpop.permute.xlu0 %2189
    %v2193 = vrot.slane %v24, 7
    %v2194 = vsel %vm66, %v2193, 0
    %v2197 = vsel %vm66, %v2155, 0
    %v2200 = vsel %vm66, %v2156, 0
    %v2203 = vsel %vm66, %v2157, 0
    %v2206 = vsel %vm66, %v2158, 0
    %v2209 = vsel %vm66, %v2159, 0
    %v2212 = vsel %vm66, %v2160, 0
    %v2215 = vsel %vm66, %v2161, 0
    %v2218 = vsel %vm66, %v2162, 0
    %v2221 = vsel %vm66, %v2163, 0
    %v2224 = vsel %vm66, %v2164, 0
    %v2227 = vsel %vm66, %v2165, 0
    %v2230 = vsel %vm66, %v2166, 0
    %v2233 = vsel %vm66, %v2167, 0
    %v2236 = vsel %vm66, %v2168, 0
    %v2239 = vsel %vm66, %v2169, 0
    %v2242 = vsel %vm66, %v2170, 0
    %v2245 = vsel %vm66, %v2171, 0
    %v2248 = vsel %vm66, %v2172, 0
    %v2251 = vsel %vm66, %v2173, 0
    %v2254 = vsel %vm66, %v2174, 0
    %v2257 = vsel %vm66, %v2175, 0
    %v2260 = vsel %vm66, %v2176, 0
    %v2263 = vsel %vm66, %v2177, 0
    %v2266 = vsel %vm66, %v2178, 0
    %v2269 = vsel %vm66, %v2179, 0
    %v2272 = vsel %vm66, %v2180, 0
    %v2275 = vsel %vm66, %v2181, 0
    %v2278 = vsel %vm66, %v2182, 0
    %v2281 = vsel %vm66, %v2183, 0
    %v2284 = vsel %vm66, %v2184, 0
    %v2287 = vsel %vm66, %v2185, 0
    %v2290 = vsel %vm66, %v2186, 0
    %2292 = vmatprep.subr.mxu0 0.0
    %2293 = vmatpush1.xpose.msra.mxu0 %v2197
    %2294 = vmatprep.subr.mxu0 0.0
    %2295 = vmatpush1.xpose.msra.mxu0 %v2200
    %2296 = vmatprep.subr.mxu0 0.0
    %2297 = vmatpush1.xpose.msra.mxu0 %v2203
    %2298 = vmatprep.subr.mxu0 0.0
    %2299 = vmatpush1.xpose.msra.mxu0 %v2206
    %2300 = vmatprep.subr.mxu0 0.0
    %2301 = vmatpush1.xpose.msra.mxu0 %v2209
    %2302 = vmatprep.subr.mxu0 0.0
    %2303 = vmatpush1.xpose.msra.mxu0 %v2212
    %2304 = vmatprep.subr.mxu0 0.0
    %2305 = vmatpush1.xpose.msra.mxu0 %v2215
    %2306 = vmatprep.subr.mxu0 0.0
    %2307 = vmatpush1.xpose.msra.mxu0 %v2218
    %2308 = vmatprep.subr.mxu0 0.0
    %2309 = vmatpush1.xpose.msra.mxu0 %v2221
    %2310 = vmatprep.subr.mxu0 0.0
    %2311 = vmatpush1.xpose.msra.mxu0 %v2224
    %2312 = vmatprep.subr.mxu0 0.0
    %2313 = vmatpush1.xpose.msra.mxu0 %v2227
    %2314 = vmatprep.subr.mxu0 0.0
    %2315 = vmatpush1.xpose.msra.mxu0 %v2230
    %2316 = vmatprep.subr.mxu0 0.0
    %2317 = vmatpush1.xpose.msra.mxu0 %v2233
    %2318 = vmatprep.subr.mxu0 0.0
    %2319 = vmatpush1.xpose.msra.mxu0 %v2236
    %2320 = vmatprep.subr.mxu0 0.0
    %2321 = vmatpush1.xpose.msra.mxu0 %v2239
    %2322 = vmatprep.subr.mxu0 0.0
    %2323 = vmatpush1.xpose.msra.mxu0 %v2242
    %2324 = vmatprep.subr.mxu0 0.0
    %2325 = vmatpush1.xpose.msra.mxu0 %v2245
    %2326 = vmatprep.subr.mxu0 0.0
    %2327 = vmatpush1.xpose.msra.mxu0 %v2248
    %2328 = vmatprep.subr.mxu0 0.0
    %2329 = vmatpush1.xpose.msra.mxu0 %v2251
    %2330 = vmatprep.subr.mxu0 0.0
    %2331 = vmatpush1.xpose.msra.mxu0 %v2254
    %2332 = vmatprep.subr.mxu0 0.0
    %2333 = vmatpush1.xpose.msra.mxu0 %v2257
    %2334 = vmatprep.subr.mxu0 0.0
    %2335 = vmatpush1.xpose.msra.mxu0 %v2260
    %2336 = vmatprep.subr.mxu0 0.0
    %2337 = vmatpush1.xpose.msra.mxu0 %v2263
    %2338 = vmatprep.subr.mxu0 0.0
    %2339 = vmatpush1.xpose.msra.mxu0 %v2266
    %2340 = vmatprep.subr.mxu0 0.0
    %2341 = vmatpush1.xpose.msra.mxu0 %v2269
    %2342 = vmatprep.subr.mxu0 0.0
    %2343 = vmatpush1.xpose.msra.mxu0 %v2272
    %2344 = vmatprep.subr.mxu0 0.0
    %2345 = vmatpush1.xpose.msra.mxu0 %v2275
    %2346 = vmatprep.subr.mxu0 0.0
    %2347 = vmatpush1.xpose.msra.mxu0 %v2278
    %2348 = vmatprep.subr.mxu0 0.0
    %2349 = vmatpush1.xpose.msra.mxu0 %v2281
    %2350 = vmatprep.subr.mxu0 0.0
    %2351 = vmatpush1.xpose.msra.mxu0 %v2284
    %2352 = vmatprep.subr.mxu0 0.0
    %2353 = vmatpush1.xpose.msra.mxu0 %v2287
    %2354 = vmatprep.subr.mxu0 0.0
    %2355 = vmatpush1.xpose.msra.mxu0 %v2290
    %2356 = vmatprep.mubr.f32.mxu0 0.0
    %2357 = vmatmul.mubr.f32.gmra.mrb[0].mxu0 %v2194
    %v2358 = vpop.f32.mrb[0].mxu0
    %v2359 = vadd.f32 %v2190, %v2358
    %v2360 = vpop.f32.mrb[0].mxu0
    %v2361 = vadd.f32 %v2190, %v2360
    %2362 = vdwg.mxu0
    %v2365 = vcombine.low %v2359, %v2361
    %v2367 = vunpack.c.l.s4 1966171168
    %v2368 = vunpack.c.0.s8 %v2367
    %v2369 = vlaneseq
    %v2370 = vshrl.u32 %v2369, 7
    %v2371 = vsub.s32 %v2368, %v2370
    %v2372 = vrot.slane %v2365, %v2371
    %v2374 = vunpack.c.l.s4 1966171168
    %v2375 = vunpack.c.0.s8 %v2374
    %v2376 = vlaneseq
    %v2377 = vshrl.u32 %v2376, 7
    %v2378 = vsub.s32 %v2375, %v2377
    %v2379 = vrot.slane %v2372, %v2378
    %v2381 = vlaneseq
    %vm2382 = vcmp.ge.s32.totalorder %v2381, 0
    %vm2383 = vcmp.lt.s32.totalorder %v2381, 256
    %vm2384 = vmand %vm2382, %vm2383
    %2385 = vst.msk [vmem:[#allocation2] sm:$0x3] %vm2384, %v2379
    // Predicated region
    $region26: #{tpu_custom_call.1} parent=1 // pred_check
      _
    $region27: #{tpu_custom_call.1} parent=1 // pred_check_branch
      %2387 = sbr.rel (0) target = $region29
    $region28: #{tpu_custom_call.1} parent=1 // pred_region
      %s2389 = ssub.s32 32, 32
      %2390 = vsyncadd [#allocation3], %s2389
      %s2392 = sshll.u32 [#allocation2], 4
      %s2393 = int_to_ptr.vmem [resolvable:$true] %s2392
      %2395 = dma.vmem_to_hbm [thread:$0]  %s2393, 32, %s6, [#allocation3]
    $region29: #{tpu_custom_call.1} parent=1 // pred_fallthru
      _
    // Predicated region
    $region30: #{tpu_custom_call.1} parent=1 // pred_check
      _
    $region31: #{tpu_custom_call.1} parent=1 // pred_check_branch
      %2397 = sbr.rel (0) target = $region33
    $region32: #{tpu_custom_call.1} parent=1 // pred_region
      %2398 = dma.done [#allocation3], 32
    $region33: #{tpu_custom_call.1} parent=1 // pred_fallthru
      _
    %2399 = vsyncpa [#allocation3], 1

</llo_original>
